<compile_context>
chip_gen: v6e
topology: v6e:2x2x1
jax: 0.10.0
libtpu: 0.0.40
codegen_flags: <defaults>
</compile_context>

<pallas_src>
import math
import functools

import jax
import jax.numpy as jnp
from jax import lax
from jax.experimental import pallas as pl
from jax.experimental.pallas import tpu as pltpu

BS, SEQ, HID, NHEAD = 2, 8, 32, 4
DK = HID // NHEAD


def _layernorm_unbiased(x, w, b, eps=1e-12):
    # Matches the PyTorch module's hand-rolled LayerNorm (torch.var default: unbiased, /(H-1)).
    h = x.shape[-1]
    m = jnp.mean(x, axis=-1, keepdims=True)
    d = x - m
    var = jnp.sum(d * d, axis=-1, keepdims=True) / (h - 1)
    return w * (d * lax.rsqrt(var + eps)) + b          # rsqrt -> EUP


def _gelu(x):
    return x * jax.nn.sigmoid(1.702 * x)


def encoder_kernel(x_ref, mask_ref, wqkv_ref, wmat_ref, vec_ref, o_ref,
                   *, nb, seq, nhead, dk, left2right, bi_direct, matmul_dtype):
    md = matmul_dtype
    hid = nhead * dk
    g = nb * nhead

    x2d = x_ref[...]                                   # (nb*seq, hid) f32
    xm = x2d.astype(md)                                # activations cast only at MXU boundary

    vecs = vec_ref[...]                                # (8, 3*hid) f32 packed vector slab
    bqkv = vecs[0:1, :]                                # (1, 3*hid), interleaved (head, {q,k,v}, dk)
    bd = vecs[1:2, 0:hid]
    ln1w, ln1b = vecs[2:3, 0:hid], vecs[3:4, 0:hid]
    b1, b2 = vecs[4:5, 0:hid], vecs[5:6, 0:hid]
    ln2w, ln2b = vecs[6:7, 0:hid], vecs[7:8, 0:hid]

    wmats = wmat_ref[...]                              # (3, hid, hid): dense, ff1, ff2

    # ---- fused QKV projection: ONE 2-D MXU matmul over the whole token slab ----
    qkv2d = jnp.dot(xm, wqkv_ref[...],
                    preferred_element_type=jnp.float32) + bqkv       # (nb*seq, 3*hid) f32

    # Head split = static layout plumbing.  The interleaved weight packing puts Q_h|K_h|V_h
    # in 3*dk adjacent lanes per head, so one slice per (batch, head) group grabs all three.
    per_bh = jnp.stack(
        [qkv2d[b * seq:(b + 1) * seq, h * 3 * dk:(h + 1) * 3 * dk]
         for b in range(nb) for h in range(nhead)], axis=0)          # (g, seq, 3*dk)
    qg = per_bh[:, :, 0 * dk:1 * dk]                                 # (g, seq, dk)
    kg = per_bh[:, :, 1 * dk:2 * dk]
    vg = per_bh[:, :, 2 * dk:3 * dk]

    # ---- additive mask built in-kernel (semantics match the PyTorch module: bi_direct=True
    #      applies the directional mask; left2right picks causal vs anti-causal) ----
    maskv = mask_ref[...]                                            # (nb, 1, seq) f32, 1.0 = valid
    rows = lax.broadcasted_iota(jnp.int32, (seq, seq), 0)
    cols = lax.broadcasted_iota(jnp.int32, (seq, seq), 1)
    if bi_direct:
        allowed = (rows >= cols) if left2right else (rows <= cols)
    else:
        allowed = jnp.ones((seq, seq), dtype=jnp.bool_)
    ok = jnp.logical_and(allowed[None, :, :], maskv > 0.5)           # (nb, seq, seq)
    add_mask = jnp.where(ok, 0.0, -10000.0)                          # (nb, seq, seq) f32

    # ---- attention, batched over the fused g = nb*nhead axis ----
    scale = 1.0 / math.sqrt(dk)
    s = jnp.einsum('gqd,gkd->gqk', qg.astype(md), kg.astype(md),
                   preferred_element_type=jnp.float32) * scale       # (g, seq, seq) f32
    # leading-dim-only reshapes (free) to broadcast the per-batch mask over heads
    s = (s.reshape(nb, nhead, seq, seq) + add_mask[:, None]).reshape(g, seq, seq)
    smax = jnp.max(s, axis=-1, keepdims=True)
    e = jnp.exp(s - smax)
    denom = jnp.sum(e, axis=-1, keepdims=True)
    p = e * pl.reciprocal(denom, approx=True)                        # softmax denom on the EUP
    ctx = jnp.einsum('gqk,gkd->gqd', p.astype(md), vg.astype(md),
                     preferred_element_type=jnp.float32)             # (g, seq, dk) f32

    # Merge heads back to a lane-dense (nb*seq, hid) slab (static concats), then ONE 2-D
    # output-projection matmul — the MXU does the head reduction inside the hid contraction.
    ctx2d = jnp.concatenate(
        [jnp.concatenate([ctx[b * nhead + h] for h in range(nhead)], axis=-1)
         for b in range(nb)], axis=0)                                # (nb*seq, hid)
    attn = jnp.dot(ctx2d.astype(md), wmats[0],
                   preferred_element_type=jnp.float32) + bd          # dense projection

    # Residual + LayerNorm 1 (f32)
    x1 = _layernorm_unbiased(attn + x2d, ln1w, ln1b)

    # FeedForward (f32 accumulation; operands optionally bf16)
    h1 = _gelu(jnp.dot(x1.astype(md), wmats[1], preferred_element_type=jnp.float32) + b1)
    h2 = jnp.dot(h1.astype(md), wmats[2], preferred_element_type=jnp.float32) + b2

    # Residual + LayerNorm 2
    o_ref[...] = _layernorm_unbiased(h2 + x1, ln2w, ln2b).astype(o_ref.dtype)


def transformer_encode(batch_x, mask_x, params, *, left2right=True, bi_direct=True,
                       matmul_dtype=jnp.float32, grid_over_batch=False):
    """batch_x: [bs, seq, hid] f32; mask_x: [bs, seq] int (1=valid, 0=pad).

    matmul_dtype: f32 (default, right choice on v5e) or bf16 (v6e/v7x MXU fast path).
    grid_over_batch: set True on v7x to shard the batch over the two TensorCores.
    """
    (wq, bq, wk, bk, wv, bv, wd, bd, ln1w, ln1b, w1, b1, w2, b2, ln2w, ln2b) = params
    bs, seq, hid = batch_x.shape
    nhead = NHEAD
    dk = hid // nhead

    # ---- wrapper-side packing (free layout plumbing outside the kernel) ----
    # Interleaved QKV weight slab: columns ordered (head, {q,k,v}, dk).
    def heads3(w):                                     # (hid, hid) -> (hid, nhead, dk)
        return w.reshape(hid, nhead, dk)
    wqkv = jnp.stack([heads3(wq), heads3(wk), heads3(wv)], axis=2).reshape(hid, 3 * hid)
    bqkv = jnp.stack([bq.reshape(nhead, dk), bk.reshape(nhead, dk), bv.reshape(nhead, dk)],
                     axis=1).reshape(3 * hid)

    # All (hid, hid) weights in one slab; all small vectors in one (8, 3*hid) slab:
    # 5 DMAs total (x, mask, wqkv, wmats, vecs) instead of 14.
    wmats = jnp.stack([wd, w1, w2], axis=0)                          # (3, hid, hid)
    vecs = jnp.zeros((8, 3 * hid), jnp.float32)
    vecs = vecs.at[0, :].set(bqkv)
    for i, v in enumerate((bd, ln1w, ln1b, b1, b2, ln2w, ln2b)):
        vecs = vecs.at[i + 1, :hid].set(v)

    # Pre-cast MXU weights host-side (no in-kernel weight converts; biases/LN stay f32).
    wqkv = wqkv.astype(matmul_dtype)
    wmats = wmats.astype(matmul_dtype)

    x2d = batch_x.reshape(bs * seq, hid).astype(jnp.float32)
    mask3 = mask_x.astype(jnp.float32).reshape(bs, 1, seq)

    nb = 1 if grid_over_batch else bs
    grid = (bs,) if grid_over_batch else (1,)

    kernel = functools.partial(
        encoder_kernel, nb=nb, seq=seq, nhead=nhead, dk=dk,
        left2right=left2right, bi_direct=bi_direct, matmul_dtype=matmul_dtype)

    def const_spec(shape):
        zeros = (0,) * len(shape)
        return pl.BlockSpec(shape, lambda i, z=zeros: z)

    if grid_over_batch:
        x_spec = pl.BlockSpec((seq, hid), lambda i: (i, 0))
        m_spec = pl.BlockSpec((1, 1, seq), lambda i: (i, 0, 0))
        o_spec = pl.BlockSpec((seq, hid), lambda i: (i, 0))
    else:
        x_spec = const_spec((bs * seq, hid))
        m_spec = const_spec((bs, 1, seq))
        o_spec = const_spec((bs * seq, hid))

    # TODO(synk): pipeline_mode=pl.Buffered(1) on the constant-index weight specs and a KV-tiled
    # online-softmax path are only needed once HID/SEQ scale up; skipped at this toy size.
    out = pl.pallas_call(
        kernel,
        out_shape=jax.ShapeDtypeStruct((bs * seq, hid), jnp.float32),
        grid_spec=pltpu.PrefetchScalarGridSpec(
            num_scalar_prefetch=0,
            grid=grid,
            in_specs=[x_spec, m_spec,
                      const_spec((hid, 3 * hid)),
                      const_spec((3, hid, hid)),
                      const_spec((8, 3 * hid))],
            out_specs=o_spec,
        ),
        compiler_params=pltpu.CompilerParams(dimension_semantics=("parallel",)),
    )(x2d, mask3, wqkv, wmats, vecs)
    return out.reshape(bs, seq, hid)


def make_params(key, hid):
    """Deterministic synthetic params. Linear weights stored pre-transposed: (in, out)."""
    ks = jax.random.split(key, 18)
    def lin(kw, kb):
        w = 0.05 * jax.random.normal(kw, (hid, hid), jnp.float32)
        b = 0.05 * jax.random.normal(kb, (hid,), jnp.float32)
        return w, b
    wq, bq = lin(ks[0], ks[1])
    wk, bk = lin(ks[2], ks[3])
    wv, bv = lin(ks[4], ks[5])
    wd, bd = lin(ks[6], ks[7])
    ln1w = jax.random.normal(ks[8], (hid,), jnp.float32)
    ln1b = jax.random.normal(ks[9], (hid,), jnp.float32)
    w1, b1 = lin(ks[10], ks[11])
    w2, b2 = lin(ks[12], ks[13])
    ln2w = jax.random.normal(ks[14], (hid,), jnp.float32)
    ln2b = jax.random.normal(ks[15], (hid,), jnp.float32)
    return (wq, bq, wk, bk, wv, bv, wd, bd, ln1w, ln1b, w1, b1, w2, b2, ln2w, ln2b)


def reference_forward(batch_x, mask_x, params):
    """Pure-JAX f32 reference mirroring the PyTorch forward (dropout=0, left2right causal)."""
    (wq, bq, wk, bk, wv, bv, wd, bd, ln1w, ln1b, w1, b1, w2, b2, ln2w, ln2b) = params
    bs, seq, hid = batch_x.shape
    mask_i = mask_x.astype(jnp.int32)[:, None, None, :]              # [bs,1,1,seq]
    one = jnp.ones((seq, seq), dtype=jnp.int32)
    mask_atten = (1 - jnp.triu(one, k=1))[None, None, :, :]
    m = mask_i & mask_atten
    m = ((1 - m) * -10000.0).astype(jnp.float32)                     # [bs,1,seq,seq]

    def split(t):
        return t.reshape(bs, seq, NHEAD, DK).transpose(0, 2, 1, 3)
    Q = split(batch_x @ wq + bq)
    K = split(batch_x @ wk + bk)
    V = split(batch_x @ wv + bv)
    qk = jnp.einsum('bhqd,bhkd->bhqk', Q, K) / math.sqrt(DK) + m
    p = jax.nn.softmax(qk, axis=-1)
    val = jnp.einsum('bhqk,bhkd->bhqd', p, V).transpose(0, 2, 1, 3).reshape(bs, seq, hid)
    attn = val @ wd + bd
    x = _layernorm_unbiased(attn + batch_x, ln1w, ln1b)
    ff = _gelu(x @ w1 + b1) @ w2 + b2
    return _layernorm_unbiased(ff + x, ln2w, ln2b)


if __name__ == "__main__":
    key = jax.random.PRNGKey(0)
    kx, kp = jax.random.split(key)
    batch_x = jax.random.normal(kx, (BS, SEQ, HID), jnp.float32)
    # mask: first batch fully valid, second batch has last 3 positions padded
    mask_x = jnp.array([[1] * SEQ, [1] * (SEQ - 3) + [0] * 3], dtype=jnp.int32)
    params = make_params(kp, HID)

    ref = reference_forward(batch_x, mask_x, params)

    # f32-operand path (grid=(1,)): only the approx EUP reciprocal and op ordering differ.
    out_f32 = jax.block_until_ready(transformer_encode(batch_x, mask_x, params))
    assert out_f32.shape == (BS, SEQ, HID)
    assert bool(jnp.all(jnp.isfinite(out_f32)))
    assert float(jnp.max(jnp.abs(out_f32 - ref))) < 1e-2, "f32 path mismatch vs reference"

    # batch-parallel grid (v7x megacore path); still exact-f32 math.
    out_mc = jax.block_until_ready(
        transformer_encode(batch_x, mask_x, params, grid_over_batch=True))
    assert out_mc.shape == (BS, SEQ, HID)
    assert float(jnp.max(jnp.abs(out_mc - ref))) < 1e-2, "grid_over_batch path mismatch"

    # bf16-operand path (v6e/v7x MXU fast path; f32 accumulation) -> looser tolerance.
    out_bf16 = jax.block_until_ready(
        transformer_encode(batch_x, mask_x, params, matmul_dtype=jnp.bfloat16))
    assert out_bf16.shape == (BS, SEQ, HID)
    assert bool(jnp.all(jnp.isfinite(out_bf16)))
    assert float(jnp.max(jnp.abs(out_bf16 - ref))) < 1e-1, "bf16 path mismatch vs reference"

    print("KERNEL_OK")
</pallas_src>

<mosaic_0001>
module attributes {stable_mosaic.version = 11 : i64} {
  func.func @encoder_kernel(%arg0: i32, %arg1: memref<16x32xf32, #tpu.memory_space<vmem>>, %arg2: memref<2x1x8xf32, #tpu.memory_space<vmem>>, %arg3: memref<32x96xf32, #tpu.memory_space<vmem>>, %arg4: memref<3x32x32xf32, #tpu.memory_space<vmem>>, %arg5: memref<8x96xf32, #tpu.memory_space<vmem>>, %arg6: memref<16x32xf32, #tpu.memory_space<vmem>>) attributes {dimension_semantics = [#tpu.dimension_semantics<parallel>], iteration_bounds = array<i64: 1>, scalar_prefetch = 0 : i64, scratch_operands = 0 : i64, tpu.core_type = #tpu.core_type<tc>, window_params = [{pipeline_mode = #tpu.pipeline_mode<synchronous>, transform_indices = @transform_0, window_bounds = array<i64: 16, 32>}, {pipeline_mode = #tpu.pipeline_mode<synchronous>, transform_indices = @transform_1, window_bounds = array<i64: 2, 1, 8>}, {pipeline_mode = #tpu.pipeline_mode<synchronous>, transform_indices = @transform_2, window_bounds = array<i64: 32, 96>}, {pipeline_mode = #tpu.pipeline_mode<synchronous>, transform_indices = @transform_3, window_bounds = array<i64: 3, 32, 32>}, {pipeline_mode = #tpu.pipeline_mode<synchronous>, transform_indices = @transform_4, window_bounds = array<i64: 8, 96>}, {pipeline_mode = #tpu.pipeline_mode<synchronous>, transform_indices = @transform_5, window_bounds = array<i64: 16, 32>}]} {
    %c0 = arith.constant 0 : index
    %c0_0 = arith.constant 0 : index
    %0 = vector.load %arg1[%c0, %c0_0] : memref<16x32xf32, #tpu.memory_space<vmem>>, vector<16x32xf32>
    %c0_1 = arith.constant 0 : index
    %c0_2 = arith.constant 0 : index
    %1 = vector.load %arg5[%c0_1, %c0_2] : memref<8x96xf32, #tpu.memory_space<vmem>>, vector<8x96xf32>
    %2 = vector.extract_strided_slice %1 {offsets = [0, 0], sizes = [1, 96], strides = [1, 1]} : vector<8x96xf32> to vector<1x96xf32>
    %3 = vector.extract_strided_slice %1 {offsets = [1, 0], sizes = [1, 32], strides = [1, 1]} : vector<8x96xf32> to vector<1x32xf32>
    %4 = vector.extract_strided_slice %1 {offsets = [2, 0], sizes = [1, 32], strides = [1, 1]} : vector<8x96xf32> to vector<1x32xf32>
    %5 = vector.extract_strided_slice %1 {offsets = [3, 0], sizes = [1, 32], strides = [1, 1]} : vector<8x96xf32> to vector<1x32xf32>
    %6 = vector.extract_strided_slice %1 {offsets = [4, 0], sizes = [1, 32], strides = [1, 1]} : vector<8x96xf32> to vector<1x32xf32>
    %7 = vector.extract_strided_slice %1 {offsets = [5, 0], sizes = [1, 32], strides = [1, 1]} : vector<8x96xf32> to vector<1x32xf32>
    %8 = vector.extract_strided_slice %1 {offsets = [6, 0], sizes = [1, 32], strides = [1, 1]} : vector<8x96xf32> to vector<1x32xf32>
    %9 = vector.extract_strided_slice %1 {offsets = [7, 0], sizes = [1, 32], strides = [1, 1]} : vector<8x96xf32> to vector<1x32xf32>
    %c0_3 = arith.constant 0 : index
    %c0_4 = arith.constant 0 : index
    %c0_5 = arith.constant 0 : index
    %10 = vector.load %arg4[%c0_3, %c0_4, %c0_5] : memref<3x32x32xf32, #tpu.memory_space<vmem>>, vector<3x32x32xf32>
    %c0_6 = arith.constant 0 : index
    %c0_7 = arith.constant 0 : index
    %11 = vector.load %arg3[%c0_6, %c0_7] : memref<32x96xf32, #tpu.memory_space<vmem>>, vector<32x96xf32>
    %cst = arith.constant dense<0.000000e+00> : vector<16x96xf32>
    %12 = tpu.matmul %0, %11, %cst {dimension_numbers = #tpu.dot_dimension_numbers<[1], [0], [0], [1], [0, 0, 1, 1], [], []>} : vector<16x32xf32>, vector<32x96xf32>, vector<16x96xf32> -> vector<16x96xf32>
    %13 = vector.broadcast %2 : vector<1x96xf32> to vector<16x96xf32>
    %14 = arith.addf %12, %13 : vector<16x96xf32>
    %15 = vector.extract_strided_slice %14 {offsets = [0, 0], sizes = [8, 24], strides = [1, 1]} : vector<16x96xf32> to vector<8x24xf32>
    %16 = vector.extract_strided_slice %14 {offsets = [0, 24], sizes = [8, 24], strides = [1, 1]} : vector<16x96xf32> to vector<8x24xf32>
    %17 = vector.extract_strided_slice %14 {offsets = [0, 48], sizes = [8, 24], strides = [1, 1]} : vector<16x96xf32> to vector<8x24xf32>
    %18 = vector.extract_strided_slice %14 {offsets = [0, 72], sizes = [8, 24], strides = [1, 1]} : vector<16x96xf32> to vector<8x24xf32>
    %19 = vector.extract_strided_slice %14 {offsets = [8, 0], sizes = [8, 24], strides = [1, 1]} : vector<16x96xf32> to vector<8x24xf32>
    %20 = vector.extract_strided_slice %14 {offsets = [8, 24], sizes = [8, 24], strides = [1, 1]} : vector<16x96xf32> to vector<8x24xf32>
    %21 = vector.extract_strided_slice %14 {offsets = [8, 48], sizes = [8, 24], strides = [1, 1]} : vector<16x96xf32> to vector<8x24xf32>
    %22 = vector.extract_strided_slice %14 {offsets = [8, 72], sizes = [8, 24], strides = [1, 1]} : vector<16x96xf32> to vector<8x24xf32>
    %23 = vector.shape_cast %15 : vector<8x24xf32> to vector<1x8x24xf32>
    %24 = vector.shape_cast %16 : vector<8x24xf32> to vector<1x8x24xf32>
    %25 = vector.shape_cast %17 : vector<8x24xf32> to vector<1x8x24xf32>
    %26 = vector.shape_cast %18 : vector<8x24xf32> to vector<1x8x24xf32>
    %27 = vector.shape_cast %19 : vector<8x24xf32> to vector<1x8x24xf32>
    %28 = vector.shape_cast %20 : vector<8x24xf32> to vector<1x8x24xf32>
    %29 = vector.shape_cast %21 : vector<8x24xf32> to vector<1x8x24xf32>
    %30 = vector.shape_cast %22 : vector<8x24xf32> to vector<1x8x24xf32>
    %31 = tpu.concatenate %23, %24, %25, %26, %27, %28, %29, %30 in 0 : vector<1x8x24xf32>, vector<1x8x24xf32>, vector<1x8x24xf32>, vector<1x8x24xf32>, vector<1x8x24xf32>, vector<1x8x24xf32>, vector<1x8x24xf32>, vector<1x8x24xf32> -> vector<8x8x24xf32>
    %32 = vector.extract_strided_slice %31 {offsets = [0, 0, 0], sizes = [8, 8, 8], strides = [1, 1, 1]} : vector<8x8x24xf32> to vector<8x8x8xf32>
    %33 = vector.extract_strided_slice %31 {offsets = [0, 0, 8], sizes = [8, 8, 8], strides = [1, 1, 1]} : vector<8x8x24xf32> to vector<8x8x8xf32>
    %34 = vector.extract_strided_slice %31 {offsets = [0, 0, 16], sizes = [8, 8, 8], strides = [1, 1, 1]} : vector<8x8x24xf32> to vector<8x8x8xf32>
    %c0_8 = arith.constant 0 : index
    %c0_9 = arith.constant 0 : index
    %c0_10 = arith.constant 0 : index
    %35 = vector.load %arg2[%c0_8, %c0_9, %c0_10] : memref<2x1x8xf32, #tpu.memory_space<vmem>>, vector<2x1x8xf32>
    %36 = tpu.iota {dimensions = array<i32: 0>} : vector<8x8xi32>
    %37 = tpu.iota {dimensions = array<i32: 1>} : vector<8x8xi32>
    %38 = arith.cmpi sge, %36, %37 : vector<8x8xi32>
    %39 = vector.shape_cast %38 : vector<8x8xi1> to vector<1x8x8xi1>
    %cst_11 = arith.constant 5.000000e-01 : f32
    %40 = vector.broadcast %cst_11 : f32 to vector<2x1x8xf32>
    %41 = arith.cmpf ogt, %35, %40 : vector<2x1x8xf32>
    %42 = vector.broadcast %39 : vector<1x8x8xi1> to vector<2x8x8xi1>
    %43 = vector.broadcast %41 : vector<2x1x8xi1> to vector<2x8x8xi1>
    %44 = arith.andi %42, %43 : vector<2x8x8xi1>
    %cst_12 = arith.constant 0.000000e+00 : f32
    %cst_13 = arith.constant -1.000000e+04 : f32
    %45 = vector.broadcast %cst_12 : f32 to vector<2x8x8xf32>
    %46 = vector.broadcast %cst_13 : f32 to vector<2x8x8xf32>
    %47 = arith.select %44, %45, %46 : vector<2x8x8xi1>, vector<2x8x8xf32>
    "tpu.trace_start"() <{level = 10 : i32, message = "gqd,gkd->gqk"}> : () -> ()
    %cst_14 = arith.constant dense<0.000000e+00> : vector<8x8x8xf32>
    %48 = tpu.matmul %32, %33, %cst_14 {dimension_numbers = #tpu.dot_dimension_numbers<[2], [2], [1], [1], [0, 0, 0, 1, 1, 1], [0], [0]>} : vector<8x8x8xf32>, vector<8x8x8xf32>, vector<8x8x8xf32> -> vector<8x8x8xf32>
    "tpu.trace_stop"() : () -> ()
    %cst_15 = arith.constant 0.353553385 : f32
    %49 = vector.broadcast %cst_15 : f32 to vector<8x8x8xf32>
    %50 = arith.mulf %48, %49 : vector<8x8x8xf32>
    %51 = vector.shape_cast %50 : vector<8x8x8xf32> to vector<2x4x8x8xf32>
    %52 = vector.shape_cast %47 : vector<2x8x8xf32> to vector<2x1x8x8xf32>
    %53 = vector.broadcast %52 : vector<2x1x8x8xf32> to vector<2x4x8x8xf32>
    %54 = arith.addf %51, %53 : vector<2x4x8x8xf32>
    %55 = vector.shape_cast %54 : vector<2x4x8x8xf32> to vector<8x8x8xf32>
    %cst_16 = arith.constant dense<0xFF800000> : vector<8x8xf32>
    %56 = vector.multi_reduction <maximumf>, %55, %cst_16 [2] : vector<8x8x8xf32> to vector<8x8xf32>
    %57 = vector.shape_cast %56 : vector<8x8xf32> to vector<8x8x1xf32>
    %58 = vector.broadcast %57 : vector<8x8x1xf32> to vector<8x8x8xf32>
    %59 = arith.subf %55, %58 : vector<8x8x8xf32>
    %60 = math.exp %59 : vector<8x8x8xf32>
    %cst_17 = arith.constant dense<0.000000e+00> : vector<8x8xf32>
    %61 = vector.multi_reduction <add>, %60, %cst_17 [2] : vector<8x8x8xf32> to vector<8x8xf32>
    %62 = vector.shape_cast %61 : vector<8x8xf32> to vector<8x8x1xf32>
    %63 = tpu.reciprocal %62 {approx = true} : vector<8x8x1xf32> -> vector<8x8x1xf32>
    %64 = vector.broadcast %63 : vector<8x8x1xf32> to vector<8x8x8xf32>
    %65 = arith.mulf %60, %64 : vector<8x8x8xf32>
    "tpu.trace_start"() <{level = 10 : i32, message = "gqk,gkd->gqd"}> : () -> ()
    %cst_18 = arith.constant dense<0.000000e+00> : vector<8x8x8xf32>
    %66 = tpu.matmul %65, %34, %cst_18 {dimension_numbers = #tpu.dot_dimension_numbers<[2], [1], [1], [2], [0, 0, 0, 1, 1, 2], [0], [0]>} : vector<8x8x8xf32>, vector<8x8x8xf32>, vector<8x8x8xf32> -> vector<8x8x8xf32>
    "tpu.trace_stop"() : () -> ()
    %67 = vector.extract_strided_slice %66 {offsets = [0, 0, 0], sizes = [1, 8, 8], strides = [1, 1, 1]} : vector<8x8x8xf32> to vector<1x8x8xf32>
    %68 = vector.shape_cast %67 : vector<1x8x8xf32> to vector<8x8xf32>
    %69 = vector.extract_strided_slice %66 {offsets = [1, 0, 0], sizes = [1, 8, 8], strides = [1, 1, 1]} : vector<8x8x8xf32> to vector<1x8x8xf32>
    %70 = vector.shape_cast %69 : vector<1x8x8xf32> to vector<8x8xf32>
    %71 = vector.extract_strided_slice %66 {offsets = [2, 0, 0], sizes = [1, 8, 8], strides = [1, 1, 1]} : vector<8x8x8xf32> to vector<1x8x8xf32>
    %72 = vector.shape_cast %71 : vector<1x8x8xf32> to vector<8x8xf32>
    %73 = vector.extract_strided_slice %66 {offsets = [3, 0, 0], sizes = [1, 8, 8], strides = [1, 1, 1]} : vector<8x8x8xf32> to vector<1x8x8xf32>
    %74 = vector.shape_cast %73 : vector<1x8x8xf32> to vector<8x8xf32>
    %75 = tpu.concatenate %68, %70, %72, %74 in 1 : vector<8x8xf32>, vector<8x8xf32>, vector<8x8xf32>, vector<8x8xf32> -> vector<8x32xf32>
    %76 = vector.extract_strided_slice %66 {offsets = [4, 0, 0], sizes = [1, 8, 8], strides = [1, 1, 1]} : vector<8x8x8xf32> to vector<1x8x8xf32>
    %77 = vector.shape_cast %76 : vector<1x8x8xf32> to vector<8x8xf32>
    %78 = vector.extract_strided_slice %66 {offsets = [5, 0, 0], sizes = [1, 8, 8], strides = [1, 1, 1]} : vector<8x8x8xf32> to vector<1x8x8xf32>
    %79 = vector.shape_cast %78 : vector<1x8x8xf32> to vector<8x8xf32>
    %80 = vector.extract_strided_slice %66 {offsets = [6, 0, 0], sizes = [1, 8, 8], strides = [1, 1, 1]} : vector<8x8x8xf32> to vector<1x8x8xf32>
    %81 = vector.shape_cast %80 : vector<1x8x8xf32> to vector<8x8xf32>
    %82 = vector.extract_strided_slice %66 {offsets = [7, 0, 0], sizes = [1, 8, 8], strides = [1, 1, 1]} : vector<8x8x8xf32> to vector<1x8x8xf32>
    %83 = vector.shape_cast %82 : vector<1x8x8xf32> to vector<8x8xf32>
    %84 = tpu.concatenate %77, %79, %81, %83 in 1 : vector<8x8xf32>, vector<8x8xf32>, vector<8x8xf32>, vector<8x8xf32> -> vector<8x32xf32>
    %85 = tpu.concatenate %75, %84 in 0 : vector<8x32xf32>, vector<8x32xf32> -> vector<16x32xf32>
    %86 = vector.extract_strided_slice %10 {offsets = [0, 0, 0], sizes = [1, 32, 32], strides = [1, 1, 1]} : vector<3x32x32xf32> to vector<1x32x32xf32>
    %87 = vector.shape_cast %86 : vector<1x32x32xf32> to vector<32x32xf32>
    %cst_19 = arith.constant dense<0.000000e+00> : vector<16x32xf32>
    %88 = tpu.matmul %85, %87, %cst_19 {dimension_numbers = #tpu.dot_dimension_numbers<[1], [0], [0], [1], [0, 0, 1, 1], [], []>} : vector<16x32xf32>, vector<32x32xf32>, vector<16x32xf32> -> vector<16x32xf32>
    %89 = vector.broadcast %3 : vector<1x32xf32> to vector<16x32xf32>
    %90 = arith.addf %88, %89 : vector<16x32xf32>
    %91 = arith.addf %90, %0 : vector<16x32xf32>
    %cst_20 = arith.constant dense<0.000000e+00> : vector<16xf32>
    %92 = vector.multi_reduction <add>, %91, %cst_20 [1] : vector<16x32xf32> to vector<16xf32>
    %93 = vector.shape_cast %92 : vector<16xf32> to vector<16x1xf32>
    %cst_21 = arith.constant 3.200000e+01 : f32
    %94 = vector.broadcast %cst_21 : f32 to vector<16x1xf32>
    %95 = arith.divf %93, %94 : vector<16x1xf32>
    %96 = vector.broadcast %95 : vector<16x1xf32> to vector<16x32xf32>
    %97 = arith.subf %91, %96 : vector<16x32xf32>
    %98 = arith.mulf %97, %97 : vector<16x32xf32>
    %cst_22 = arith.constant dense<0.000000e+00> : vector<16xf32>
    %99 = vector.multi_reduction <add>, %98, %cst_22 [1] : vector<16x32xf32> to vector<16xf32>
    %100 = vector.shape_cast %99 : vector<16xf32> to vector<16x1xf32>
    %cst_23 = arith.constant 3.100000e+01 : f32
    %101 = vector.broadcast %cst_23 : f32 to vector<16x1xf32>
    %102 = arith.divf %100, %101 : vector<16x1xf32>
    %cst_24 = arith.constant 9.99999996E-13 : f32
    %103 = vector.broadcast %cst_24 : f32 to vector<16x1xf32>
    %104 = arith.addf %102, %103 : vector<16x1xf32>
    %105 = math.rsqrt %104 : vector<16x1xf32>
    %106 = vector.broadcast %105 : vector<16x1xf32> to vector<16x32xf32>
    %107 = arith.mulf %97, %106 : vector<16x32xf32>
    %108 = vector.broadcast %4 : vector<1x32xf32> to vector<16x32xf32>
    %109 = arith.mulf %108, %107 : vector<16x32xf32>
    %110 = vector.broadcast %5 : vector<1x32xf32> to vector<16x32xf32>
    %111 = arith.addf %109, %110 : vector<16x32xf32>
    %112 = vector.extract_strided_slice %10 {offsets = [1, 0, 0], sizes = [1, 32, 32], strides = [1, 1, 1]} : vector<3x32x32xf32> to vector<1x32x32xf32>
    %113 = vector.shape_cast %112 : vector<1x32x32xf32> to vector<32x32xf32>
    %cst_25 = arith.constant dense<0.000000e+00> : vector<16x32xf32>
    %114 = tpu.matmul %111, %113, %cst_25 {dimension_numbers = #tpu.dot_dimension_numbers<[1], [0], [0], [1], [0, 0, 1, 1], [], []>} : vector<16x32xf32>, vector<32x32xf32>, vector<16x32xf32> -> vector<16x32xf32>
    %115 = vector.broadcast %6 : vector<1x32xf32> to vector<16x32xf32>
    %116 = arith.addf %114, %115 : vector<16x32xf32>
    %cst_26 = arith.constant 1.702000e+00 : f32
    %117 = vector.broadcast %cst_26 : f32 to vector<16x32xf32>
    %118 = arith.mulf %117, %116 : vector<16x32xf32>
    %119 = arith.negf %118 : vector<16x32xf32>
    %120 = math.exp %119 : vector<16x32xf32>
    %cst_27 = arith.constant 1.000000e+00 : f32
    %121 = vector.broadcast %cst_27 : f32 to vector<16x32xf32>
    %122 = arith.addf %121, %120 : vector<16x32xf32>
    %123 = arith.divf %121, %122 : vector<16x32xf32>
    %124 = arith.mulf %116, %123 : vector<16x32xf32>
    %125 = vector.extract_strided_slice %10 {offsets = [2, 0, 0], sizes = [1, 32, 32], strides = [1, 1, 1]} : vector<3x32x32xf32> to vector<1x32x32xf32>
    %126 = vector.shape_cast %125 : vector<1x32x32xf32> to vector<32x32xf32>
    %cst_28 = arith.constant dense<0.000000e+00> : vector<16x32xf32>
    %127 = tpu.matmul %124, %126, %cst_28 {dimension_numbers = #tpu.dot_dimension_numbers<[1], [0], [0], [1], [0, 0, 1, 1], [], []>} : vector<16x32xf32>, vector<32x32xf32>, vector<16x32xf32> -> vector<16x32xf32>
    %128 = vector.broadcast %7 : vector<1x32xf32> to vector<16x32xf32>
    %129 = arith.addf %127, %128 : vector<16x32xf32>
    %130 = arith.addf %129, %111 : vector<16x32xf32>
    %cst_29 = arith.constant dense<0.000000e+00> : vector<16xf32>
    %131 = vector.multi_reduction <add>, %130, %cst_29 [1] : vector<16x32xf32> to vector<16xf32>
    %132 = vector.shape_cast %131 : vector<16xf32> to vector<16x1xf32>
    %cst_30 = arith.constant 3.200000e+01 : f32
    %133 = vector.broadcast %cst_30 : f32 to vector<16x1xf32>
    %134 = arith.divf %132, %133 : vector<16x1xf32>
    %135 = vector.broadcast %134 : vector<16x1xf32> to vector<16x32xf32>
    %136 = arith.subf %130, %135 : vector<16x32xf32>
    %137 = arith.mulf %136, %136 : vector<16x32xf32>
    %cst_31 = arith.constant dense<0.000000e+00> : vector<16xf32>
    %138 = vector.multi_reduction <add>, %137, %cst_31 [1] : vector<16x32xf32> to vector<16xf32>
    %139 = vector.shape_cast %138 : vector<16xf32> to vector<16x1xf32>
    %cst_32 = arith.constant 3.100000e+01 : f32
    %140 = vector.broadcast %cst_32 : f32 to vector<16x1xf32>
    %141 = arith.divf %139, %140 : vector<16x1xf32>
    %cst_33 = arith.constant 9.99999996E-13 : f32
    %142 = vector.broadcast %cst_33 : f32 to vector<16x1xf32>
    %143 = arith.addf %141, %142 : vector<16x1xf32>
    %144 = math.rsqrt %143 : vector<16x1xf32>
    %145 = vector.broadcast %144 : vector<16x1xf32> to vector<16x32xf32>
    %146 = arith.mulf %136, %145 : vector<16x32xf32>
    %147 = vector.broadcast %8 : vector<1x32xf32> to vector<16x32xf32>
    %148 = arith.mulf %147, %146 : vector<16x32xf32>
    %149 = vector.broadcast %9 : vector<1x32xf32> to vector<16x32xf32>
    %150 = arith.addf %148, %149 : vector<16x32xf32>
    %c0_34 = arith.constant 0 : index
    %c0_35 = arith.constant 0 : index
    %151 = vector.load %arg6[%c0_34, %c0_35] : memref<16x32xf32, #tpu.memory_space<vmem>>, vector<16x32xf32>
    tpu.vector_store %arg6[%c0_34, %c0_35], %150 {strides = array<i32>} : memref<16x32xf32, #tpu.memory_space<vmem>>, vector<16x32xf32>,
    return
  }
  func.func @transform_0(%arg0: i32) -> (i32, i32) {
    %c0_i32 = arith.constant 0 : i32
    %c0_i32_0 = arith.constant 0 : i32
    %c0_i32_1 = arith.constant 0 : i32
    return %c0_i32, %c0_i32_0 : i32, i32
  }
  func.func @transform_1(%arg0: i32) -> (i32, i32, i32) {
    %c0_i32 = arith.constant 0 : i32
    %c0_i32_0 = arith.constant 0 : i32
    %c0_i32_1 = arith.constant 0 : i32
    %c0_i32_2 = arith.constant 0 : i32
    return %c0_i32, %c0_i32_0, %c0_i32_1 : i32, i32, i32
  }
  func.func @transform_2(%arg0: i32) -> (i32, i32) {
    %c0_i32 = arith.constant 0 : i32
    %c0_i32_0 = arith.constant 0 : i32
    %c0_i32_1 = arith.constant 0 : i32
    return %c0_i32, %c0_i32_0 : i32, i32
  }
  func.func @transform_3(%arg0: i32) -> (i32, i32, i32) {
    %c0_i32 = arith.constant 0 : i32
    %c0_i32_0 = arith.constant 0 : i32
    %c0_i32_1 = arith.constant 0 : i32
    %c0_i32_2 = arith.constant 0 : i32
    return %c0_i32, %c0_i32_0, %c0_i32_1 : i32, i32, i32
  }
  func.func @transform_4(%arg0: i32) -> (i32, i32) {
    %c0_i32 = arith.constant 0 : i32
    %c0_i32_0 = arith.constant 0 : i32
    %c0_i32_1 = arith.constant 0 : i32
    return %c0_i32, %c0_i32_0 : i32, i32
  }
  func.func @transform_5(%arg0: i32) -> (i32, i32) {
    %c0_i32 = arith.constant 0 : i32
    %c0_i32_0 = arith.constant 0 : i32
    %c0_i32_1 = arith.constant 0 : i32
    return %c0_i32, %c0_i32_0 : i32, i32
  }
}

</mosaic_0001>

<llo_original>
// kernel: tpu_custom_call.1
$region0: #{tpu_custom_call.1}
  #allocation0 [shape = 'u32[]', space=smem, size = 0x4, offset = 0x4, fixed_abs, tag = 'smem constant byte address 0x4 - core index']
  #allocation1 [shape = 'u32[144,128]{1,0:T(1,128)}', space=vmem, size = 0x12000, scoped, tag = 'internal scratch']
  %s0 = inlined_call_operand.hbm [shape: f32[16,32], index: 0, kind: input, shape index: {}]
  %s1 = inlined_call_operand.hbm [shape: f32[2,1,8], index: 1, kind: input, shape index: {}]
  %s2 = inlined_call_operand.hbm [shape: f32[32,96], index: 2, kind: input, shape index: {}]
  %s3 = inlined_call_operand.hbm [shape: f32[3,32,32], index: 3, kind: input, shape index: {}]
  %s4 = inlined_call_operand.hbm [shape: f32[8,96], index: 4, kind: input, shape index: {}]
  %s5 = inlined_call_operand.hbm [shape: f32[16,32], index: 5, kind: output, shape index: {}]
  %s6 = sld [smem:[#allocation0]]
  $region50: #{tpu_custom_call.1} parent=0
    _
  %s8 = ssub.s32 1, %s6
  %s9 = scalar_select 0, %s8, %s6
  $region1: #{tpu_custom_call.1} parent=0
    #allocation2 [shape = 'u8[8192]{0}', space=vmem, size = 0x2000, scoped, tag = 'input window, operand 0, single buffered']
    #allocation3 [shape = 's32[1]{0}', space=sflag, size = 0x4, scoped, tag = 'scoped memory for tpu_custom_call.1']
    #allocation4 [shape = 's32[1]{0}', space=sflag, size = 0x4, scoped, tag = 'scoped memory for tpu_custom_call.1']
    #allocation5 [shape = 'u8[1024]{0}', space=vmem, size = 0x400, scoped, tag = 'input window, operand 1, single buffered']
    #allocation6 [shape = 's32[1]{0}', space=sflag, size = 0x4, scoped, tag = 'scoped memory for tpu_custom_call.1']
    #allocation7 [shape = 'u8[16384]{0}', space=vmem, size = 0x4000, scoped, tag = 'input window, operand 2, single buffered']
    #allocation8 [shape = 'u8[49152]{0}', space=vmem, size = 0xc000, scoped, tag = 'input window, operand 3, single buffered']
    #allocation9 [shape = 's32[1]{0}', space=sflag, size = 0x4, scoped, tag = 'scoped memory for tpu_custom_call.1']
    #allocation10 [shape = 'u8[4096]{0}', space=vmem, size = 0x1000, scoped, tag = 'input window, operand 4, single buffered']
    #allocation11 [shape = 'u8[8192]{0}', space=vmem, size = 0x2000, scoped, tag = 'output window, operand 0, single buffered']
    %10 = vsyncpa [#allocation3], 0
    %11 = vsyncpa [#allocation6], 0
    %12 = vsyncpa [#allocation9], 0
    %13 = vsyncpa [#allocation4], 0
    // Predicated region
    $region2: #{tpu_custom_call.1} parent=1 // pred_check
      _
    $region3: #{tpu_custom_call.1} parent=1 // pred_check_branch
      %15 = sbr.rel (0) target = $region5
    $region4: #{tpu_custom_call.1} parent=1 // pred_region
      %s17 = ssub.s32 256, 256
      %18 = vsyncadd [#allocation3], %s17
      %s19 = sshll.u32 [#allocation2], 4
      %s20 = int_to_ptr.vmem [resolvable:$true] %s19
      %25 = dma.hbm_to_vmem [thread:$0]  %s0, 256, %s20, [#allocation3], 128, 128, 8
    $region5: #{tpu_custom_call.1} parent=1 // pred_fallthru
      _
    // Predicated region
    $region6: #{tpu_custom_call.1} parent=1 // pred_check
      _
    $region7: #{tpu_custom_call.1} parent=1 // pred_check_branch
      %27 = sbr.rel (0) target = $region9
    $region8: #{tpu_custom_call.1} parent=1 // pred_region
      %s29 = ssub.s32 32, 32
      %30 = vsyncadd [#allocation6], %s29
      %s31 = sshll.u32 [#allocation5], 4
      %s32 = int_to_ptr.vmem [resolvable:$true] %s31
      %37 = dma.hbm_to_vmem [thread:$0]  %s1, 32, %s32, [#allocation6], 16, 16, 1
    $region9: #{tpu_custom_call.1} parent=1 // pred_fallthru
      _
    // Predicated region
    $region10: #{tpu_custom_call.1} parent=1 // pred_check
      _
    $region11: #{tpu_custom_call.1} parent=1 // pred_check_branch
      %39 = sbr.rel (0) target = $region13
    $region12: #{tpu_custom_call.1} parent=1 // pred_region
      %s41 = ssub.s32 512, 512
      %42 = vsyncadd [#allocation6], %s41
      %s43 = sshll.u32 [#allocation7], 4
      %s44 = int_to_ptr.vmem [resolvable:$true] %s43
      %49 = dma.hbm_to_vmem [thread:$0]  %s2, 512, %s44, [#allocation6], 128, 128, 8
    $region13: #{tpu_custom_call.1} parent=1 // pred_fallthru
      _
    // Predicated region
    $region14: #{tpu_custom_call.1} parent=1 // pred_check
      _
    $region15: #{tpu_custom_call.1} parent=1 // pred_check_branch
      %51 = sbr.rel (0) target = $region17
    $region16: #{tpu_custom_call.1} parent=1 // pred_region
      %s53 = ssub.s32 1536, 1536
      %54 = vsyncadd [#allocation9], %s53
      %s55 = sshll.u32 [#allocation8], 4
      %s56 = int_to_ptr.vmem [resolvable:$true] %s55
      %61 = dma.hbm_to_vmem [thread:$0]  %s3, 1536, %s56, [#allocation9], 128, 128, 8
    $region17: #{tpu_custom_call.1} parent=1 // pred_fallthru
      _
    // Predicated region
    $region18: #{tpu_custom_call.1} parent=1 // pred_check
      _
    $region19: #{tpu_custom_call.1} parent=1 // pred_check_branch
      %63 = sbr.rel (0) target = $region21
    $region20: #{tpu_custom_call.1} parent=1 // pred_region
      %s65 = ssub.s32 128, 128
      %66 = vsyncadd [#allocation9], %s65
      %s68 = sshll.u32 [#allocation10], 4
      %s69 = int_to_ptr.vmem [resolvable:$true] %s68
      %71 = dma.hbm_to_vmem [thread:$0]  %s4, 128, %s69, [#allocation9]
    $region21: #{tpu_custom_call.1} parent=1 // pred_fallthru
      _
    // Predicated region
    $region22: #{tpu_custom_call.1} parent=1 // pred_check
      _
    $region23: #{tpu_custom_call.1} parent=1 // pred_check_branch
      %73 = sbr.rel (0) target = $region25
    $region24: #{tpu_custom_call.1} parent=1 // pred_region
      %74 = dma.done [#allocation3], 256
    $region25: #{tpu_custom_call.1} parent=1 // pred_fallthru
      _
    // Predicated region
    $region26: #{tpu_custom_call.1} parent=1 // pred_check
      _
    $region27: #{tpu_custom_call.1} parent=1 // pred_check_branch
      %76 = sbr.rel (0) target = $region29
    $region28: #{tpu_custom_call.1} parent=1 // pred_region
      %77 = dma.done [#allocation6], 32
    $region29: #{tpu_custom_call.1} parent=1 // pred_fallthru
      _
    // Predicated region
    $region30: #{tpu_custom_call.1} parent=1 // pred_check
      _
    $region31: #{tpu_custom_call.1} parent=1 // pred_check_branch
      %79 = sbr.rel (0) target = $region33
    $region32: #{tpu_custom_call.1} parent=1 // pred_region
      %80 = dma.done [#allocation6], 512
    $region33: #{tpu_custom_call.1} parent=1 // pred_fallthru
      _
    // Predicated region
    $region34: #{tpu_custom_call.1} parent=1 // pred_check
      _
    $region35: #{tpu_custom_call.1} parent=1 // pred_check_branch
      %82 = sbr.rel (0) target = $region37
    $region36: #{tpu_custom_call.1} parent=1 // pred_region
      %83 = dma.done [#allocation9], 1536
    $region37: #{tpu_custom_call.1} parent=1 // pred_fallthru
      _
    // Predicated region
    $region38: #{tpu_custom_call.1} parent=1 // pred_check
      _
    $region39: #{tpu_custom_call.1} parent=1 // pred_check_branch
      %85 = sbr.rel (0) target = $region41
    $region40: #{tpu_custom_call.1} parent=1 // pred_region
      %86 = dma.done [#allocation9], 128
    $region41: #{tpu_custom_call.1} parent=1 // pred_fallthru
      _
    %v87 = vld [vmem:[#allocation2] sm:$0xff]
    %v88 = vld [vmem:[#allocation2 + $0x8] sm:$0xff]
    %v89 = vld [vmem:[#allocation10] sm:$0xff]
    %v90 = vld [vmem:[#allocation8] sm:$0xff]
    %v91 = vld [vmem:[#allocation8 + $0x8] sm:$0xff]
    %v92 = vld [vmem:[#allocation8 + $0x10] sm:$0xff]
    %v93 = vld [vmem:[#allocation8 + $0x18] sm:$0xff]
    %v94 = vld [vmem:[#allocation8 + $0x20] sm:$0xff]
    %v95 = vld [vmem:[#allocation8 + $0x28] sm:$0xff]
    %v96 = vld [vmem:[#allocation8 + $0x30] sm:$0xff]
    %v97 = vld [vmem:[#allocation8 + $0x38] sm:$0xff]
    %v98 = vld [vmem:[#allocation8 + $0x40] sm:$0xff]
    %v99 = vld [vmem:[#allocation8 + $0x48] sm:$0xff]
    %v100 = vld [vmem:[#allocation8 + $0x50] sm:$0xff]
    %v101 = vld [vmem:[#allocation8 + $0x58] sm:$0xff]
    %v102 = vld [vmem:[#allocation7] sm:$0xff]
    %v103 = vld [vmem:[#allocation7 + $0x8] sm:$0xff]
    %v104 = vld [vmem:[#allocation7 + $0x10] sm:$0xff]
    %v105 = vld [vmem:[#allocation7 + $0x18] sm:$0xff]
    %v106 = vlaneseq
    %v107 = vshrl.u32 %v106, 7
    %v108 = vsub.s32 0, %v107
    %v109 = vrot.slane %v89, %v108
    %vm110 = vcmask 261120
    %v112 = vsel %vm110, %v87, 0
    %v115 = vsel %vm110, %v88, 0
    %117 = vmatprep.subr.mxu0 0.0
    %118 = vmatpush1.msra.mxu0 0.0
    %119 = vmatprep.subr.mxu0 0.0
    %120 = vmatpush1.msra.mxu0 0.0
    %121 = vmatprep.subr.mxu0 0.0
    %122 = vmatpush1.msra.mxu0 0.0
    %123 = vmatprep.subr.mxu0 0.0
    %124 = vmatpush1.msra.mxu0 0.0
    %125 = vmatprep.subr.mxu0 0.0
    %126 = vmatpush1.msra.mxu0 0.0
    %127 = vmatprep.subr.mxu0 0.0
    %128 = vmatpush1.msra.mxu0 0.0
    %129 = vmatprep.subr.mxu0 0.0
    %130 = vmatpush1.msra.mxu0 0.0
    %131 = vmatprep.subr.mxu0 0.0
    %132 = vmatpush1.msra.mxu0 0.0
    %133 = vmatprep.subr.mxu0 0.0
    %134 = vmatpush1.msra.mxu0 0.0
    %135 = vmatprep.subr.mxu0 0.0
    %136 = vmatpush1.msra.mxu0 0.0
    %137 = vmatprep.subr.mxu0 0.0
    %138 = vmatpush1.msra.mxu0 0.0
    %139 = vmatprep.subr.mxu0 0.0
    %140 = vmatpush1.msra.mxu0 0.0
    %141 = vmatprep.subr.mxu0 0.0
    %142 = vmatpush1.msra.mxu0 %v105
    %143 = vmatprep.subr.mxu0 0.0
    %144 = vmatpush1.msra.mxu0 %v104
    %145 = vmatprep.subr.mxu0 0.0
    %146 = vmatpush1.msra.mxu0 %v103
    %147 = vmatprep.subr.mxu0 0.0
    %148 = vmatpush1.msra.mxu0 %v102
    %149 = vmatprep.subr.mxu0 0.0
    %150 = vmatpush2.msra.mxu0 0.0
    %151 = vmatprep.subr.mxu0 0.0
    %152 = vmatpush2.msra.mxu0 0.0
    %153 = vmatprep.subr.mxu0 0.0
    %154 = vmatpush2.msra.mxu0 0.0
    %155 = vmatprep.subr.mxu0 0.0
    %156 = vmatpush2.msra.mxu0 0.0
    %157 = vmatprep.subr.mxu0 0.0
    %158 = vmatpush2.msra.mxu0 0.0
    %159 = vmatprep.subr.mxu0 0.0
    %160 = vmatpush2.msra.mxu0 0.0
    %161 = vmatprep.subr.mxu0 0.0
    %162 = vmatpush2.msra.mxu0 0.0
    %163 = vmatprep.subr.mxu0 0.0
    %164 = vmatpush2.msra.mxu0 0.0
    %165 = vmatprep.subr.mxu0 0.0
    %166 = vmatpush2.msra.mxu0 0.0
    %167 = vmatprep.subr.mxu0 0.0
    %168 = vmatpush2.msra.mxu0 0.0
    %169 = vmatprep.subr.mxu0 0.0
    %170 = vmatpush2.msra.mxu0 0.0
    %171 = vmatprep.subr.mxu0 0.0
    %172 = vmatpush2.msra.mxu0 0.0
    %173 = vmatprep.subr.mxu0 0.0
    %174 = vmatpush2.msra.mxu0 0.0
    %175 = vmatprep.subr.mxu0 0.0
    %176 = vmatpush2.msra.mxu0 0.0
    %177 = vmatprep.subr.mxu0 0.0
    %178 = vmatpush2.msra.mxu0 0.0
    %179 = vmatprep.subr.mxu0 0.0
    %180 = vmatpush2.msra.mxu0 0.0
    %181 = vmatprep.mubr.f32.mxu0 0.0
    %182 = vmatmul.mubr.f32.gmra.mxu0 %v112
    %v183 = vpop.f32.mrf.mxu0
    %v184 = vadd.f32 %v109, %v183
    %v185 = vpop.f32.mrf.mxu0
    %186 = vmatprep.mubr.f32.mxu0 0.0
    %187 = vmatmul.mubr.f32.gmra.mxu0 %v115
    %v188 = vpop.f32.mrf.mxu0
    %v189 = vadd.f32 %v109, %v188
    %v190 = vpop.f32.mrf.mxu0
    %191 = vdwg.mxu0
    %193 = vrot.lane.b32.xlu0 %v184, 104
    %v194 = vpop.permute.xlu0 %193
    %195 = vrot.lane.b32.xlu0 %v184, 80
    %v196 = vpop.permute.xlu0 %195
    %197 = vrot.lane.b32.xlu0 %v184, 56
    %v198 = vpop.permute.xlu0 %197
    %200 = vrot.lane.b32.xlu0 %v189, 104
    %v201 = vpop.permute.xlu0 %200
    %202 = vrot.lane.b32.xlu0 %v189, 80
    %v203 = vpop.permute.xlu0 %202
    %204 = vrot.lane.b32.xlu0 %v189, 56
    %v205 = vpop.permute.xlu0 %204
    %v206 = vld [vmem:[#allocation5] sm:$0x1]
    %v207 = vld [vmem:[#allocation5 + $0x1] sm:$0x1]
    %v208 = vlaneseq
    %v209 = vshrl.u32 %v208, 7
    %v210 = vlaneseq
    %v211 = vand.u32 %v210, 127
    %vm212 = vcmp.ge.s32.totalorder %v209, %v211
    %vm213 = vcmp.gt.f32.partialorder %v206, 0.5
    %vm214 = vcmp.gt.f32.partialorder %v207, 0.5
    %v215 = vsel %vm212, 1, 0
    %vm216 = vcmp.eq.s32.totalorder %v215, 1
    %v217 = vsel %vm213, 1, 0
    %v218 = vsel %vm214, 1, 0
    %v219 = vlaneseq
    %v220 = vshrl.u32 %v219, 7
    %v221 = vsub.s32 0, %v220
    %v222 = vrot.slane %v217, %v221
    %v223 = vlaneseq
    %v224 = vshrl.u32 %v223, 7
    %v225 = vsub.s32 0, %v224
    %v226 = vrot.slane %v218, %v225
    %vm227 = vcmp.eq.s32.totalorder %v222, 1
    %vm228 = vcmp.eq.s32.totalorder %v226, 1
    %vm229 = vmand %vm216, %vm227
    %vm230 = vmand %vm216, %vm228
    %v231 = vsel %vm229, 0.0, -10000.0
    %v232 = vsel %vm230, 0.0, -10000.0
    %233 = vrot.lane.b32.xlu0 %v184, 120
    %v234 = vpop.permute.xlu0 %233
    %vm235 = vcmask 64512
    %v236 = vsel %vm235, %v184, 0
    %v238 = vsel %vm235, %v234, 0
    %240 = vmatprep.subr.mxu0 0.0
    %241 = vmatpush1.xpose.msra.mxu0 0.0
    %242 = vmatprep.subr.mxu0 0.0
    %243 = vmatpush1.xpose.msra.mxu0 0.0
    %244 = vmatprep.subr.mxu0 0.0
    %245 = vmatpush1.xpose.msra.mxu0 0.0
    %246 = vmatprep.subr.mxu0 0.0
    %247 = vmatpush1.xpose.msra.mxu0 0.0
    %248 = vmatprep.subr.mxu0 0.0
    %249 = vmatpush1.xpose.msra.mxu0 0.0
    %250 = vmatprep.subr.mxu0 0.0
    %251 = vmatpush1.xpose.msra.mxu0 0.0
    %252 = vmatprep.subr.mxu0 0.0
    %253 = vmatpush1.xpose.msra.mxu0 0.0
    %254 = vmatprep.subr.mxu0 0.0
    %255 = vmatpush1.xpose.msra.mxu0 0.0
    %256 = vmatprep.subr.mxu0 0.0
    %257 = vmatpush1.xpose.msra.mxu0 0.0
    %258 = vmatprep.subr.mxu0 0.0
    %259 = vmatpush1.xpose.msra.mxu0 0.0
    %260 = vmatprep.subr.mxu0 0.0
    %261 = vmatpush1.xpose.msra.mxu0 0.0
    %262 = vmatprep.subr.mxu0 0.0
    %263 = vmatpush1.xpose.msra.mxu0 0.0
    %264 = vmatprep.subr.mxu0 0.0
    %265 = vmatpush1.xpose.msra.mxu0 0.0
    %266 = vmatprep.subr.mxu0 0.0
    %267 = vmatpush1.xpose.msra.mxu0 0.0
    %268 = vmatprep.subr.mxu0 0.0
    %269 = vmatpush1.xpose.msra.mxu0 0.0
    %270 = vmatprep.subr.mxu0 0.0
    %271 = vmatpush1.xpose.msra.mxu0 %v238
    %272 = vmatprep.subr.mxu0 0.0
    %273 = vmatpush2.xpose.msra.mxu0 0.0
    %274 = vmatprep.subr.mxu0 0.0
    %275 = vmatpush2.xpose.msra.mxu0 0.0
    %276 = vmatprep.subr.mxu0 0.0
    %277 = vmatpush2.xpose.msra.mxu0 0.0
    %278 = vmatprep.subr.mxu0 0.0
    %279 = vmatpush2.xpose.msra.mxu0 0.0
    %280 = vmatprep.subr.mxu0 0.0
    %281 = vmatpush2.xpose.msra.mxu0 0.0
    %282 = vmatprep.subr.mxu0 0.0
    %283 = vmatpush2.xpose.msra.mxu0 0.0
    %284 = vmatprep.subr.mxu0 0.0
    %285 = vmatpush2.xpose.msra.mxu0 0.0
    %286 = vmatprep.subr.mxu0 0.0
    %287 = vmatpush2.xpose.msra.mxu0 0.0
    %288 = vmatprep.subr.mxu0 0.0
    %289 = vmatpush2.xpose.msra.mxu0 0.0
    %290 = vmatprep.subr.mxu0 0.0
    %291 = vmatpush2.xpose.msra.mxu0 0.0
    %292 = vmatprep.subr.mxu0 0.0
    %293 = vmatpush2.xpose.msra.mxu0 0.0
    %294 = vmatprep.subr.mxu0 0.0
    %295 = vmatpush2.xpose.msra.mxu0 0.0
    %296 = vmatprep.subr.mxu0 0.0
    %297 = vmatpush2.xpose.msra.mxu0 0.0
    %298 = vmatprep.subr.mxu0 0.0
    %299 = vmatpush2.xpose.msra.mxu0 0.0
    %300 = vmatprep.subr.mxu0 0.0
    %301 = vmatpush2.xpose.msra.mxu0 0.0
    %302 = vmatprep.subr.mxu0 0.0
    %303 = vmatpush2.xpose.msra.mxu0 0.0
    %304 = vmatprep.mubr.f32.mxu0 0.0
    %305 = vmatmul.mubr.f32.gmra.mxu0 %v236
    %v306 = vpop.f32.mrf.mxu0
    %v307 = vadd.f32 0.0, %v306
    %v308 = vpop.f32.mrf.mxu0
    %309 = vdwg.mxu0
    %310 = vrot.lane.b32.xlu0 %v194, 120
    %v311 = vpop.permute.xlu0 %310
    %v312 = vsel %vm235, %v194, 0
    %v314 = vsel %vm235, %v311, 0
    %316 = vmatprep.subr.mxu0 0.0
    %317 = vmatpush1.xpose.msra.mxu0 0.0
    %318 = vmatprep.subr.mxu0 0.0
    %319 = vmatpush1.xpose.msra.mxu0 0.0
    %320 = vmatprep.subr.mxu0 0.0
    %321 = vmatpush1.xpose.msra.mxu0 0.0
    %322 = vmatprep.subr.mxu0 0.0
    %323 = vmatpush1.xpose.msra.mxu0 0.0
    %324 = vmatprep.subr.mxu0 0.0
    %325 = vmatpush1.xpose.msra.mxu0 0.0
    %326 = vmatprep.subr.mxu0 0.0
    %327 = vmatpush1.xpose.msra.mxu0 0.0
    %328 = vmatprep.subr.mxu0 0.0
    %329 = vmatpush1.xpose.msra.mxu0 0.0
    %330 = vmatprep.subr.mxu0 0.0
    %331 = vmatpush1.xpose.msra.mxu0 0.0
    %332 = vmatprep.subr.mxu0 0.0
    %333 = vmatpush1.xpose.msra.mxu0 0.0
    %334 = vmatprep.subr.mxu0 0.0
    %335 = vmatpush1.xpose.msra.mxu0 0.0
    %336 = vmatprep.subr.mxu0 0.0
    %337 = vmatpush1.xpose.msra.mxu0 0.0
    %338 = vmatprep.subr.mxu0 0.0
    %339 = vmatpush1.xpose.msra.mxu0 0.0
    %340 = vmatprep.subr.mxu0 0.0
    %341 = vmatpush1.xpose.msra.mxu0 0.0
    %342 = vmatprep.subr.mxu0 0.0
    %343 = vmatpush1.xpose.msra.mxu0 0.0
    %344 = vmatprep.subr.mxu0 0.0
    %345 = vmatpush1.xpose.msra.mxu0 0.0
    %346 = vmatprep.subr.mxu0 0.0
    %347 = vmatpush1.xpose.msra.mxu0 %v314
    %348 = vmatprep.subr.mxu0 0.0
    %349 = vmatpush2.xpose.msra.mxu0 0.0
    %350 = vmatprep.subr.mxu0 0.0
    %351 = vmatpush2.xpose.msra.mxu0 0.0
    %352 = vmatprep.subr.mxu0 0.0
    %353 = vmatpush2.xpose.msra.mxu0 0.0
    %354 = vmatprep.subr.mxu0 0.0
    %355 = vmatpush2.xpose.msra.mxu0 0.0
    %356 = vmatprep.subr.mxu0 0.0
    %357 = vmatpush2.xpose.msra.mxu0 0.0
    %358 = vmatprep.subr.mxu0 0.0
    %359 = vmatpush2.xpose.msra.mxu0 0.0
    %360 = vmatprep.subr.mxu0 0.0
    %361 = vmatpush2.xpose.msra.mxu0 0.0
    %362 = vmatprep.subr.mxu0 0.0
    %363 = vmatpush2.xpose.msra.mxu0 0.0
    %364 = vmatprep.subr.mxu0 0.0
    %365 = vmatpush2.xpose.msra.mxu0 0.0
    %366 = vmatprep.subr.mxu0 0.0
    %367 = vmatpush2.xpose.msra.mxu0 0.0
    %368 = vmatprep.subr.mxu0 0.0
    %369 = vmatpush2.xpose.msra.mxu0 0.0
    %370 = vmatprep.subr.mxu0 0.0
    %371 = vmatpush2.xpose.msra.mxu0 0.0
    %372 = vmatprep.subr.mxu0 0.0
    %373 = vmatpush2.xpose.msra.mxu0 0.0
    %374 = vmatprep.subr.mxu0 0.0
    %375 = vmatpush2.xpose.msra.mxu0 0.0
    %376 = vmatprep.subr.mxu0 0.0
    %377 = vmatpush2.xpose.msra.mxu0 0.0
    %378 = vmatprep.subr.mxu0 0.0
    %379 = vmatpush2.xpose.msra.mxu0 0.0
    %380 = vmatprep.mubr.f32.mxu0 0.0
    %381 = vmatmul.mubr.f32.gmra.mxu0 %v312
    %v382 = vpop.f32.mrf.mxu0
    %v383 = vadd.f32 0.0, %v382
    %v384 = vpop.f32.mrf.mxu0
    %385 = vdwg.mxu0
    %386 = vrot.lane.b32.xlu0 %v196, 120
    %v387 = vpop.permute.xlu0 %386
    %v388 = vsel %vm235, %v196, 0
    %v390 = vsel %vm235, %v387, 0
    %392 = vmatprep.subr.mxu0 0.0
    %393 = vmatpush1.xpose.msra.mxu0 0.0
    %394 = vmatprep.subr.mxu0 0.0
    %395 = vmatpush1.xpose.msra.mxu0 0.0
    %396 = vmatprep.subr.mxu0 0.0
    %397 = vmatpush1.xpose.msra.mxu0 0.0
    %398 = vmatprep.subr.mxu0 0.0
    %399 = vmatpush1.xpose.msra.mxu0 0.0
    %400 = vmatprep.subr.mxu0 0.0
    %401 = vmatpush1.xpose.msra.mxu0 0.0
    %402 = vmatprep.subr.mxu0 0.0
    %403 = vmatpush1.xpose.msra.mxu0 0.0
    %404 = vmatprep.subr.mxu0 0.0
    %405 = vmatpush1.xpose.msra.mxu0 0.0
    %406 = vmatprep.subr.mxu0 0.0
    %407 = vmatpush1.xpose.msra.mxu0 0.0
    %408 = vmatprep.subr.mxu0 0.0
    %409 = vmatpush1.xpose.msra.mxu0 0.0
    %410 = vmatprep.subr.mxu0 0.0
    %411 = vmatpush1.xpose.msra.mxu0 0.0
    %412 = vmatprep.subr.mxu0 0.0
    %413 = vmatpush1.xpose.msra.mxu0 0.0
    %414 = vmatprep.subr.mxu0 0.0
    %415 = vmatpush1.xpose.msra.mxu0 0.0
    %416 = vmatprep.subr.mxu0 0.0
    %417 = vmatpush1.xpose.msra.mxu0 0.0
    %418 = vmatprep.subr.mxu0 0.0
    %419 = vmatpush1.xpose.msra.mxu0 0.0
    %420 = vmatprep.subr.mxu0 0.0
    %421 = vmatpush1.xpose.msra.mxu0 0.0
    %422 = vmatprep.subr.mxu0 0.0
    %423 = vmatpush1.xpose.msra.mxu0 %v390
    %424 = vmatprep.subr.mxu0 0.0
    %425 = vmatpush2.xpose.msra.mxu0 0.0
    %426 = vmatprep.subr.mxu0 0.0
    %427 = vmatpush2.xpose.msra.mxu0 0.0
    %428 = vmatprep.subr.mxu0 0.0
    %429 = vmatpush2.xpose.msra.mxu0 0.0
    %430 = vmatprep.subr.mxu0 0.0
    %431 = vmatpush2.xpose.msra.mxu0 0.0
    %432 = vmatprep.subr.mxu0 0.0
    %433 = vmatpush2.xpose.msra.mxu0 0.0
    %434 = vmatprep.subr.mxu0 0.0
    %435 = vmatpush2.xpose.msra.mxu0 0.0
    %436 = vmatprep.subr.mxu0 0.0
    %437 = vmatpush2.xpose.msra.mxu0 0.0
    %438 = vmatprep.subr.mxu0 0.0
    %439 = vmatpush2.xpose.msra.mxu0 0.0
    %440 = vmatprep.subr.mxu0 0.0
    %441 = vmatpush2.xpose.msra.mxu0 0.0
    %442 = vmatprep.subr.mxu0 0.0
    %443 = vmatpush2.xpose.msra.mxu0 0.0
    %444 = vmatprep.subr.mxu0 0.0
    %445 = vmatpush2.xpose.msra.mxu0 0.0
    %446 = vmatprep.subr.mxu0 0.0
    %447 = vmatpush2.xpose.msra.mxu0 0.0
    %448 = vmatprep.subr.mxu0 0.0
    %449 = vmatpush2.xpose.msra.mxu0 0.0
    %450 = vmatprep.subr.mxu0 0.0
    %451 = vmatpush2.xpose.msra.mxu0 0.0
    %452 = vmatprep.subr.mxu0 0.0
    %453 = vmatpush2.xpose.msra.mxu0 0.0
    %454 = vmatprep.subr.mxu0 0.0
    %455 = vmatpush2.xpose.msra.mxu0 0.0
    %456 = vmatprep.mubr.f32.mxu0 0.0
    %457 = vmatmul.mubr.f32.gmra.mxu0 %v388
    %v458 = vpop.f32.mrf.mxu0
    %v459 = vadd.f32 0.0, %v458
    %v460 = vpop.f32.mrf.mxu0
    %461 = vdwg.mxu0
    %462 = vrot.lane.b32.xlu0 %v198, 120
    %v463 = vpop.permute.xlu0 %462
    %v464 = vsel %vm235, %v198, 0
    %v466 = vsel %vm235, %v463, 0
    %468 = vmatprep.subr.mxu0 0.0
    %469 = vmatpush1.xpose.msra.mxu0 0.0
    %470 = vmatprep.subr.mxu0 0.0
    %471 = vmatpush1.xpose.msra.mxu0 0.0
    %472 = vmatprep.subr.mxu0 0.0
    %473 = vmatpush1.xpose.msra.mxu0 0.0
    %474 = vmatprep.subr.mxu0 0.0
    %475 = vmatpush1.xpose.msra.mxu0 0.0
    %476 = vmatprep.subr.mxu0 0.0
    %477 = vmatpush1.xpose.msra.mxu0 0.0
    %478 = vmatprep.subr.mxu0 0.0
    %479 = vmatpush1.xpose.msra.mxu0 0.0
    %480 = vmatprep.subr.mxu0 0.0
    %481 = vmatpush1.xpose.msra.mxu0 0.0
    %482 = vmatprep.subr.mxu0 0.0
    %483 = vmatpush1.xpose.msra.mxu0 0.0
    %484 = vmatprep.subr.mxu0 0.0
    %485 = vmatpush1.xpose.msra.mxu0 0.0
    %486 = vmatprep.subr.mxu0 0.0
    %487 = vmatpush1.xpose.msra.mxu0 0.0
    %488 = vmatprep.subr.mxu0 0.0
    %489 = vmatpush1.xpose.msra.mxu0 0.0
    %490 = vmatprep.subr.mxu0 0.0
    %491 = vmatpush1.xpose.msra.mxu0 0.0
    %492 = vmatprep.subr.mxu0 0.0
    %493 = vmatpush1.xpose.msra.mxu0 0.0
    %494 = vmatprep.subr.mxu0 0.0
    %495 = vmatpush1.xpose.msra.mxu0 0.0
    %496 = vmatprep.subr.mxu0 0.0
    %497 = vmatpush1.xpose.msra.mxu0 0.0
    %498 = vmatprep.subr.mxu0 0.0
    %499 = vmatpush1.xpose.msra.mxu0 %v466
    %500 = vmatprep.subr.mxu0 0.0
    %501 = vmatpush2.xpose.msra.mxu0 0.0
    %502 = vmatprep.subr.mxu0 0.0
    %503 = vmatpush2.xpose.msra.mxu0 0.0
    %504 = vmatprep.subr.mxu0 0.0
    %505 = vmatpush2.xpose.msra.mxu0 0.0
    %506 = vmatprep.subr.mxu0 0.0
    %507 = vmatpush2.xpose.msra.mxu0 0.0
    %508 = vmatprep.subr.mxu0 0.0
    %509 = vmatpush2.xpose.msra.mxu0 0.0
    %510 = vmatprep.subr.mxu0 0.0
    %511 = vmatpush2.xpose.msra.mxu0 0.0
    %512 = vmatprep.subr.mxu0 0.0
    %513 = vmatpush2.xpose.msra.mxu0 0.0
    %514 = vmatprep.subr.mxu0 0.0
    %515 = vmatpush2.xpose.msra.mxu0 0.0
    %516 = vmatprep.subr.mxu0 0.0
    %517 = vmatpush2.xpose.msra.mxu0 0.0
    %518 = vmatprep.subr.mxu0 0.0
    %519 = vmatpush2.xpose.msra.mxu0 0.0
    %520 = vmatprep.subr.mxu0 0.0
    %521 = vmatpush2.xpose.msra.mxu0 0.0
    %522 = vmatprep.subr.mxu0 0.0
    %523 = vmatpush2.xpose.msra.mxu0 0.0
    %524 = vmatprep.subr.mxu0 0.0
    %525 = vmatpush2.xpose.msra.mxu0 0.0
    %526 = vmatprep.subr.mxu0 0.0
    %527 = vmatpush2.xpose.msra.mxu0 0.0
    %528 = vmatprep.subr.mxu0 0.0
    %529 = vmatpush2.xpose.msra.mxu0 0.0
    %530 = vmatprep.subr.mxu0 0.0
    %531 = vmatpush2.xpose.msra.mxu0 0.0
    %532 = vmatprep.mubr.f32.mxu0 0.0
    %533 = vmatmul.mubr.f32.gmra.mxu0 %v464
    %v534 = vpop.f32.mrf.mxu0
    %v535 = vadd.f32 0.0, %v534
    %v536 = vpop.f32.mrf.mxu0
    %537 = vdwg.mxu0
    %538 = vrot.lane.b32.xlu0 %v189, 120
    %v539 = vpop.permute.xlu0 %538
    %v540 = vsel %vm235, %v189, 0
    %v542 = vsel %vm235, %v539, 0
    %544 = vmatprep.subr.mxu0 0.0
    %545 = vmatpush1.xpose.msra.mxu0 0.0
    %546 = vmatprep.subr.mxu0 0.0
    %547 = vmatpush1.xpose.msra.mxu0 0.0
    %548 = vmatprep.subr.mxu0 0.0
    %549 = vmatpush1.xpose.msra.mxu0 0.0
    %550 = vmatprep.subr.mxu0 0.0
    %551 = vmatpush1.xpose.msra.mxu0 0.0
    %552 = vmatprep.subr.mxu0 0.0
    %553 = vmatpush1.xpose.msra.mxu0 0.0
    %554 = vmatprep.subr.mxu0 0.0
    %555 = vmatpush1.xpose.msra.mxu0 0.0
    %556 = vmatprep.subr.mxu0 0.0
    %557 = vmatpush1.xpose.msra.mxu0 0.0
    %558 = vmatprep.subr.mxu0 0.0
    %559 = vmatpush1.xpose.msra.mxu0 0.0
    %560 = vmatprep.subr.mxu0 0.0
    %561 = vmatpush1.xpose.msra.mxu0 0.0
    %562 = vmatprep.subr.mxu0 0.0
    %563 = vmatpush1.xpose.msra.mxu0 0.0
    %564 = vmatprep.subr.mxu0 0.0
    %565 = vmatpush1.xpose.msra.mxu0 0.0
    %566 = vmatprep.subr.mxu0 0.0
    %567 = vmatpush1.xpose.msra.mxu0 0.0
    %568 = vmatprep.subr.mxu0 0.0
    %569 = vmatpush1.xpose.msra.mxu0 0.0
    %570 = vmatprep.subr.mxu0 0.0
    %571 = vmatpush1.xpose.msra.mxu0 0.0
    %572 = vmatprep.subr.mxu0 0.0
    %573 = vmatpush1.xpose.msra.mxu0 0.0
    %574 = vmatprep.subr.mxu0 0.0
    %575 = vmatpush1.xpose.msra.mxu0 %v542
    %576 = vmatprep.subr.mxu0 0.0
    %577 = vmatpush2.xpose.msra.mxu0 0.0
    %578 = vmatprep.subr.mxu0 0.0
    %579 = vmatpush2.xpose.msra.mxu0 0.0
    %580 = vmatprep.subr.mxu0 0.0
    %581 = vmatpush2.xpose.msra.mxu0 0.0
    %582 = vmatprep.subr.mxu0 0.0
    %583 = vmatpush2.xpose.msra.mxu0 0.0
    %584 = vmatprep.subr.mxu0 0.0
    %585 = vmatpush2.xpose.msra.mxu0 0.0
    %586 = vmatprep.subr.mxu0 0.0
    %587 = vmatpush2.xpose.msra.mxu0 0.0
    %588 = vmatprep.subr.mxu0 0.0
    %589 = vmatpush2.xpose.msra.mxu0 0.0
    %590 = vmatprep.subr.mxu0 0.0
    %591 = vmatpush2.xpose.msra.mxu0 0.0
    %592 = vmatprep.subr.mxu0 0.0
    %593 = vmatpush2.xpose.msra.mxu0 0.0
    %594 = vmatprep.subr.mxu0 0.0
    %595 = vmatpush2.xpose.msra.mxu0 0.0
    %596 = vmatprep.subr.mxu0 0.0
    %597 = vmatpush2.xpose.msra.mxu0 0.0
    %598 = vmatprep.subr.mxu0 0.0
    %599 = vmatpush2.xpose.msra.mxu0 0.0
    %600 = vmatprep.subr.mxu0 0.0
    %601 = vmatpush2.xpose.msra.mxu0 0.0
    %602 = vmatprep.subr.mxu0 0.0
    %603 = vmatpush2.xpose.msra.mxu0 0.0
    %604 = vmatprep.subr.mxu0 0.0
    %605 = vmatpush2.xpose.msra.mxu0 0.0
    %606 = vmatprep.subr.mxu0 0.0
    %607 = vmatpush2.xpose.msra.mxu0 0.0
    %608 = vmatprep.mubr.f32.mxu0 0.0
    %609 = vmatmul.mubr.f32.gmra.mxu0 %v540
    %v610 = vpop.f32.mrf.mxu0
    %v611 = vadd.f32 0.0, %v610
    %v612 = vpop.f32.mrf.mxu0
    %613 = vdwg.mxu0
    %614 = vrot.lane.b32.xlu0 %v201, 120
    %v615 = vpop.permute.xlu0 %614
    %v616 = vsel %vm235, %v201, 0
    %v618 = vsel %vm235, %v615, 0
    %620 = vmatprep.subr.mxu0 0.0
    %621 = vmatpush1.xpose.msra.mxu0 0.0
    %622 = vmatprep.subr.mxu0 0.0
    %623 = vmatpush1.xpose.msra.mxu0 0.0
    %624 = vmatprep.subr.mxu0 0.0
    %625 = vmatpush1.xpose.msra.mxu0 0.0
    %626 = vmatprep.subr.mxu0 0.0
    %627 = vmatpush1.xpose.msra.mxu0 0.0
    %628 = vmatprep.subr.mxu0 0.0
    %629 = vmatpush1.xpose.msra.mxu0 0.0
    %630 = vmatprep.subr.mxu0 0.0
    %631 = vmatpush1.xpose.msra.mxu0 0.0
    %632 = vmatprep.subr.mxu0 0.0
    %633 = vmatpush1.xpose.msra.mxu0 0.0
    %634 = vmatprep.subr.mxu0 0.0
    %635 = vmatpush1.xpose.msra.mxu0 0.0
    %636 = vmatprep.subr.mxu0 0.0
    %637 = vmatpush1.xpose.msra.mxu0 0.0
    %638 = vmatprep.subr.mxu0 0.0
    %639 = vmatpush1.xpose.msra.mxu0 0.0
    %640 = vmatprep.subr.mxu0 0.0
    %641 = vmatpush1.xpose.msra.mxu0 0.0
    %642 = vmatprep.subr.mxu0 0.0
    %643 = vmatpush1.xpose.msra.mxu0 0.0
    %644 = vmatprep.subr.mxu0 0.0
    %645 = vmatpush1.xpose.msra.mxu0 0.0
    %646 = vmatprep.subr.mxu0 0.0
    %647 = vmatpush1.xpose.msra.mxu0 0.0
    %648 = vmatprep.subr.mxu0 0.0
    %649 = vmatpush1.xpose.msra.mxu0 0.0
    %650 = vmatprep.subr.mxu0 0.0
    %651 = vmatpush1.xpose.msra.mxu0 %v618
    %652 = vmatprep.subr.mxu0 0.0
    %653 = vmatpush2.xpose.msra.mxu0 0.0
    %654 = vmatprep.subr.mxu0 0.0
    %655 = vmatpush2.xpose.msra.mxu0 0.0
    %656 = vmatprep.subr.mxu0 0.0
    %657 = vmatpush2.xpose.msra.mxu0 0.0
    %658 = vmatprep.subr.mxu0 0.0
    %659 = vmatpush2.xpose.msra.mxu0 0.0
    %660 = vmatprep.subr.mxu0 0.0
    %661 = vmatpush2.xpose.msra.mxu0 0.0
    %662 = vmatprep.subr.mxu0 0.0
    %663 = vmatpush2.xpose.msra.mxu0 0.0
    %664 = vmatprep.subr.mxu0 0.0
    %665 = vmatpush2.xpose.msra.mxu0 0.0
    %666 = vmatprep.subr.mxu0 0.0
    %667 = vmatpush2.xpose.msra.mxu0 0.0
    %668 = vmatprep.subr.mxu0 0.0
    %669 = vmatpush2.xpose.msra.mxu0 0.0
    %670 = vmatprep.subr.mxu0 0.0
    %671 = vmatpush2.xpose.msra.mxu0 0.0
    %672 = vmatprep.subr.mxu0 0.0
    %673 = vmatpush2.xpose.msra.mxu0 0.0
    %674 = vmatprep.subr.mxu0 0.0
    %675 = vmatpush2.xpose.msra.mxu0 0.0
    %676 = vmatprep.subr.mxu0 0.0
    %677 = vmatpush2.xpose.msra.mxu0 0.0
    %678 = vmatprep.subr.mxu0 0.0
    %679 = vmatpush2.xpose.msra.mxu0 0.0
    %680 = vmatprep.subr.mxu0 0.0
    %681 = vmatpush2.xpose.msra.mxu0 0.0
    %682 = vmatprep.subr.mxu0 0.0
    %683 = vmatpush2.xpose.msra.mxu0 0.0
    %684 = vmatprep.mubr.f32.mxu0 0.0
    %685 = vmatmul.mubr.f32.gmra.mxu0 %v616
    %v686 = vpop.f32.mrf.mxu0
    %v687 = vadd.f32 0.0, %v686
    %v688 = vpop.f32.mrf.mxu0
    %689 = vdwg.mxu0
    %690 = vrot.lane.b32.xlu0 %v203, 120
    %v691 = vpop.permute.xlu0 %690
    %v692 = vsel %vm235, %v203, 0
    %v694 = vsel %vm235, %v691, 0
    %696 = vmatprep.subr.mxu0 0.0
    %697 = vmatpush1.xpose.msra.mxu0 0.0
    %698 = vmatprep.subr.mxu0 0.0
    %699 = vmatpush1.xpose.msra.mxu0 0.0
    %700 = vmatprep.subr.mxu0 0.0
    %701 = vmatpush1.xpose.msra.mxu0 0.0
    %702 = vmatprep.subr.mxu0 0.0
    %703 = vmatpush1.xpose.msra.mxu0 0.0
    %704 = vmatprep.subr.mxu0 0.0
    %705 = vmatpush1.xpose.msra.mxu0 0.0
    %706 = vmatprep.subr.mxu0 0.0
    %707 = vmatpush1.xpose.msra.mxu0 0.0
    %708 = vmatprep.subr.mxu0 0.0
    %709 = vmatpush1.xpose.msra.mxu0 0.0
    %710 = vmatprep.subr.mxu0 0.0
    %711 = vmatpush1.xpose.msra.mxu0 0.0
    %712 = vmatprep.subr.mxu0 0.0
    %713 = vmatpush1.xpose.msra.mxu0 0.0
    %714 = vmatprep.subr.mxu0 0.0
    %715 = vmatpush1.xpose.msra.mxu0 0.0
    %716 = vmatprep.subr.mxu0 0.0
    %717 = vmatpush1.xpose.msra.mxu0 0.0
    %718 = vmatprep.subr.mxu0 0.0
    %719 = vmatpush1.xpose.msra.mxu0 0.0
    %720 = vmatprep.subr.mxu0 0.0
    %721 = vmatpush1.xpose.msra.mxu0 0.0
    %722 = vmatprep.subr.mxu0 0.0
    %723 = vmatpush1.xpose.msra.mxu0 0.0
    %724 = vmatprep.subr.mxu0 0.0
    %725 = vmatpush1.xpose.msra.mxu0 0.0
    %726 = vmatprep.subr.mxu0 0.0
    %727 = vmatpush1.xpose.msra.mxu0 %v694
    %728 = vmatprep.subr.mxu0 0.0
    %729 = vmatpush2.xpose.msra.mxu0 0.0
    %730 = vmatprep.subr.mxu0 0.0
    %731 = vmatpush2.xpose.msra.mxu0 0.0
    %732 = vmatprep.subr.mxu0 0.0
    %733 = vmatpush2.xpose.msra.mxu0 0.0
    %734 = vmatprep.subr.mxu0 0.0
    %735 = vmatpush2.xpose.msra.mxu0 0.0
    %736 = vmatprep.subr.mxu0 0.0
    %737 = vmatpush2.xpose.msra.mxu0 0.0
    %738 = vmatprep.subr.mxu0 0.0
    %739 = vmatpush2.xpose.msra.mxu0 0.0
    %740 = vmatprep.subr.mxu0 0.0
    %741 = vmatpush2.xpose.msra.mxu0 0.0
    %742 = vmatprep.subr.mxu0 0.0
    %743 = vmatpush2.xpose.msra.mxu0 0.0
    %744 = vmatprep.subr.mxu0 0.0
    %745 = vmatpush2.xpose.msra.mxu0 0.0
    %746 = vmatprep.subr.mxu0 0.0
    %747 = vmatpush2.xpose.msra.mxu0 0.0
    %748 = vmatprep.subr.mxu0 0.0
    %749 = vmatpush2.xpose.msra.mxu0 0.0
    %750 = vmatprep.subr.mxu0 0.0
    %751 = vmatpush2.xpose.msra.mxu0 0.0
    %752 = vmatprep.subr.mxu0 0.0
    %753 = vmatpush2.xpose.msra.mxu0 0.0
    %754 = vmatprep.subr.mxu0 0.0
    %755 = vmatpush2.xpose.msra.mxu0 0.0
    %756 = vmatprep.subr.mxu0 0.0
    %757 = vmatpush2.xpose.msra.mxu0 0.0
    %758 = vmatprep.subr.mxu0 0.0
    %759 = vmatpush2.xpose.msra.mxu0 0.0
    %760 = vmatprep.mubr.f32.mxu0 0.0
    %761 = vmatmul.mubr.f32.gmra.mxu0 %v692
    %v762 = vpop.f32.mrf.mxu0
    %v763 = vadd.f32 0.0, %v762
    %v764 = vpop.f32.mrf.mxu0
    %765 = vdwg.mxu0
    %766 = vrot.lane.b32.xlu0 %v205, 120
    %v767 = vpop.permute.xlu0 %766
    %v768 = vsel %vm235, %v205, 0
    %v770 = vsel %vm235, %v767, 0
    %772 = vmatprep.subr.mxu0 0.0
    %773 = vmatpush1.xpose.msra.mxu0 0.0
    %774 = vmatprep.subr.mxu0 0.0
    %775 = vmatpush1.xpose.msra.mxu0 0.0
    %776 = vmatprep.subr.mxu0 0.0
    %777 = vmatpush1.xpose.msra.mxu0 0.0
    %778 = vmatprep.subr.mxu0 0.0
    %779 = vmatpush1.xpose.msra.mxu0 0.0
    %780 = vmatprep.subr.mxu0 0.0
    %781 = vmatpush1.xpose.msra.mxu0 0.0
    %782 = vmatprep.subr.mxu0 0.0
    %783 = vmatpush1.xpose.msra.mxu0 0.0
    %784 = vmatprep.subr.mxu0 0.0
    %785 = vmatpush1.xpose.msra.mxu0 0.0
    %786 = vmatprep.subr.mxu0 0.0
    %787 = vmatpush1.xpose.msra.mxu0 0.0
    %788 = vmatprep.subr.mxu0 0.0
    %789 = vmatpush1.xpose.msra.mxu0 0.0
    %790 = vmatprep.subr.mxu0 0.0
    %791 = vmatpush1.xpose.msra.mxu0 0.0
    %792 = vmatprep.subr.mxu0 0.0
    %793 = vmatpush1.xpose.msra.mxu0 0.0
    %794 = vmatprep.subr.mxu0 0.0
    %795 = vmatpush1.xpose.msra.mxu0 0.0
    %796 = vmatprep.subr.mxu0 0.0
    %797 = vmatpush1.xpose.msra.mxu0 0.0
    %798 = vmatprep.subr.mxu0 0.0
    %799 = vmatpush1.xpose.msra.mxu0 0.0
    %800 = vmatprep.subr.mxu0 0.0
    %801 = vmatpush1.xpose.msra.mxu0 0.0
    %802 = vmatprep.subr.mxu0 0.0
    %803 = vmatpush1.xpose.msra.mxu0 %v770
    %804 = vmatprep.subr.mxu0 0.0
    %805 = vmatpush2.xpose.msra.mxu0 0.0
    %806 = vmatprep.subr.mxu0 0.0
    %807 = vmatpush2.xpose.msra.mxu0 0.0
    %808 = vmatprep.subr.mxu0 0.0
    %809 = vmatpush2.xpose.msra.mxu0 0.0
    %810 = vmatprep.subr.mxu0 0.0
    %811 = vmatpush2.xpose.msra.mxu0 0.0
    %812 = vmatprep.subr.mxu0 0.0
    %813 = vmatpush2.xpose.msra.mxu0 0.0
    %814 = vmatprep.subr.mxu0 0.0
    %815 = vmatpush2.xpose.msra.mxu0 0.0
    %816 = vmatprep.subr.mxu0 0.0
    %817 = vmatpush2.xpose.msra.mxu0 0.0
    %818 = vmatprep.subr.mxu0 0.0
    %819 = vmatpush2.xpose.msra.mxu0 0.0
    %820 = vmatprep.subr.mxu0 0.0
    %821 = vmatpush2.xpose.msra.mxu0 0.0
    %822 = vmatprep.subr.mxu0 0.0
    %823 = vmatpush2.xpose.msra.mxu0 0.0
    %824 = vmatprep.subr.mxu0 0.0
    %825 = vmatpush2.xpose.msra.mxu0 0.0
    %826 = vmatprep.subr.mxu0 0.0
    %827 = vmatpush2.xpose.msra.mxu0 0.0
    %828 = vmatprep.subr.mxu0 0.0
    %829 = vmatpush2.xpose.msra.mxu0 0.0
    %830 = vmatprep.subr.mxu0 0.0
    %831 = vmatpush2.xpose.msra.mxu0 0.0
    %832 = vmatprep.subr.mxu0 0.0
    %833 = vmatpush2.xpose.msra.mxu0 0.0
    %834 = vmatprep.subr.mxu0 0.0
    %835 = vmatpush2.xpose.msra.mxu0 0.0
    %836 = vmatprep.mubr.f32.mxu0 0.0
    %837 = vmatmul.mubr.f32.gmra.mxu0 %v768
    %v838 = vpop.f32.mrf.mxu0
    %v839 = vadd.f32 0.0, %v838
    %v840 = vpop.f32.mrf.mxu0
    %841 = vdwg.mxu0
    %v842 = vmul.f32 %v307, 0.35355338
    %v843 = vmul.f32 %v383, 0.35355338
    %v844 = vmul.f32 %v459, 0.35355338
    %v845 = vmul.f32 %v535, 0.35355338
    %v846 = vmul.f32 %v611, 0.35355338
    %v847 = vmul.f32 %v687, 0.35355338
    %v848 = vmul.f32 %v763, 0.35355338
    %v849 = vmul.f32 %v839, 0.35355338
    %v850 = vadd.f32 %v842, %v231
    %v851 = vadd.f32 %v843, %v231
    %v852 = vadd.f32 %v844, %v231
    %v853 = vadd.f32 %v845, %v231
    %v854 = vadd.f32 %v846, %v232
    %v855 = vadd.f32 %v847, %v232
    %v856 = vadd.f32 %v848, %v232
    %v857 = vadd.f32 %v849, %v232
    %v858 = vsel %vm235, %v850, -inf
    %859 = vmax.xlane.f32.xlu0 %v858
    %v860 = vpop.xlane.xlu0 %859
    %v861 = vsel %vm235, %v851, -inf
    %862 = vmax.xlane.f32.xlu0 %v861
    %v863 = vpop.xlane.xlu0 %862
    %v864 = vsel %vm235, %v852, -inf
    %865 = vmax.xlane.f32.xlu0 %v864
    %v866 = vpop.xlane.xlu0 %865
    %v867 = vsel %vm235, %v853, -inf
    %868 = vmax.xlane.f32.xlu0 %v867
    %v869 = vpop.xlane.xlu0 %868
    %v870 = vsel %vm235, %v854, -inf
    %871 = vmax.xlane.f32.xlu0 %v870
    %v872 = vpop.xlane.xlu0 %871
    %v873 = vsel %vm235, %v855, -inf
    %874 = vmax.xlane.f32.xlu0 %v873
    %v875 = vpop.xlane.xlu0 %874
    %v876 = vsel %vm235, %v856, -inf
    %877 = vmax.xlane.f32.xlu0 %v876
    %v878 = vpop.xlane.xlu0 %877
    %v879 = vsel %vm235, %v857, -inf
    %880 = vmax.xlane.f32.xlu0 %v879
    %v881 = vpop.xlane.xlu0 %880
    %v882 = vsub.f32 %v850, %v860
    %v883 = vsub.f32 %v851, %v863
    %v884 = vsub.f32 %v852, %v866
    %v885 = vsub.f32 %v853, %v869
    %v886 = vsub.f32 %v854, %v872
    %v887 = vsub.f32 %v855, %v875
    %v888 = vsub.f32 %v856, %v878
    %v889 = vsub.f32 %v857, %v881
    %v890 = vmul.f32 %v882, 1.442695
    %v891 = vpow.pop %v890
    %v892 = vmul.f32 %v883, 1.442695
    %v893 = vpow.pop %v892
    %v894 = vmul.f32 %v884, 1.442695
    %v895 = vpow.pop %v894
    %v896 = vmul.f32 %v885, 1.442695
    %v897 = vpow.pop %v896
    %v898 = vmul.f32 %v886, 1.442695
    %v899 = vpow.pop %v898
    %v900 = vmul.f32 %v887, 1.442695
    %v901 = vpow.pop %v900
    %v902 = vmul.f32 %v888, 1.442695
    %v903 = vpow.pop %v902
    %v904 = vmul.f32 %v889, 1.442695
    %v905 = vpow.pop %v904
    %v906 = vsel %vm235, %v891, 0.0
    %907 = vadd.xlane.f32.xlu0 %v906
    %v908 = vpop.xlane.xlu0 %907
    %v909 = vsel %vm235, %v893, 0.0
    %910 = vadd.xlane.f32.xlu0 %v909
    %v911 = vpop.xlane.xlu0 %910
    %v912 = vsel %vm235, %v895, 0.0
    %913 = vadd.xlane.f32.xlu0 %v912
    %v914 = vpop.xlane.xlu0 %913
    %v915 = vsel %vm235, %v897, 0.0
    %916 = vadd.xlane.f32.xlu0 %v915
    %v917 = vpop.xlane.xlu0 %916
    %v918 = vsel %vm235, %v899, 0.0
    %919 = vadd.xlane.f32.xlu0 %v918
    %v920 = vpop.xlane.xlu0 %919
    %v921 = vsel %vm235, %v901, 0.0
    %922 = vadd.xlane.f32.xlu0 %v921
    %v923 = vpop.xlane.xlu0 %922
    %v924 = vsel %vm235, %v903, 0.0
    %925 = vadd.xlane.f32.xlu0 %v924
    %v926 = vpop.xlane.xlu0 %925
    %v927 = vsel %vm235, %v905, 0.0
    %928 = vadd.xlane.f32.xlu0 %v927
    %v929 = vpop.xlane.xlu0 %928
    %v930 = vrcp.pop %v908
    %v931 = vrcp.pop %v911
    %v932 = vrcp.pop %v914
    %v933 = vrcp.pop %v917
    %v934 = vrcp.pop %v920
    %v935 = vrcp.pop %v923
    %v936 = vrcp.pop %v926
    %v937 = vrcp.pop %v929
    %v938 = vmul.f32 %v891, %v930
    %v939 = vmul.f32 %v893, %v931
    %v940 = vmul.f32 %v895, %v932
    %v941 = vmul.f32 %v897, %v933
    %v942 = vmul.f32 %v899, %v934
    %v943 = vmul.f32 %v901, %v935
    %v944 = vmul.f32 %v903, %v936
    %v945 = vmul.f32 %v905, %v937
    %946 = vrot.lane.b32.xlu0 %v184, 112
    %v947 = vpop.permute.xlu0 %946
    %v950 = vsel %vm235, %v938, 0
    %952 = vmatprep.subr.mxu0 0.0
    %953 = vmatpush1.msra.mxu0 0.0
    %954 = vmatprep.subr.mxu0 0.0
    %955 = vmatpush1.msra.mxu0 0.0
    %956 = vmatprep.subr.mxu0 0.0
    %957 = vmatpush1.msra.mxu0 0.0
    %958 = vmatprep.subr.mxu0 0.0
    %959 = vmatpush1.msra.mxu0 0.0
    %960 = vmatprep.subr.mxu0 0.0
    %961 = vmatpush1.msra.mxu0 0.0
    %962 = vmatprep.subr.mxu0 0.0
    %963 = vmatpush1.msra.mxu0 0.0
    %964 = vmatprep.subr.mxu0 0.0
    %965 = vmatpush1.msra.mxu0 0.0
    %966 = vmatprep.subr.mxu0 0.0
    %967 = vmatpush1.msra.mxu0 0.0
    %968 = vmatprep.subr.mxu0 0.0
    %969 = vmatpush1.msra.mxu0 0.0
    %970 = vmatprep.subr.mxu0 0.0
    %971 = vmatpush1.msra.mxu0 0.0
    %972 = vmatprep.subr.mxu0 0.0
    %973 = vmatpush1.msra.mxu0 0.0
    %974 = vmatprep.subr.mxu0 0.0
    %975 = vmatpush1.msra.mxu0 0.0
    %976 = vmatprep.subr.mxu0 0.0
    %977 = vmatpush1.msra.mxu0 0.0
    %978 = vmatprep.subr.mxu0 0.0
    %979 = vmatpush1.msra.mxu0 0.0
    %980 = vmatprep.subr.mxu0 0.0
    %981 = vmatpush1.msra.mxu0 0.0
    %982 = vmatprep.subr.mxu0 0.0
    %983 = vmatpush1.msra.mxu0 %v947
    %984 = vmatprep.subr.mxu0 0.0
    %985 = vmatpush2.msra.mxu0 0.0
    %986 = vmatprep.subr.mxu0 0.0
    %987 = vmatpush2.msra.mxu0 0.0
    %988 = vmatprep.subr.mxu0 0.0
    %989 = vmatpush2.msra.mxu0 0.0
    %990 = vmatprep.subr.mxu0 0.0
    %991 = vmatpush2.msra.mxu0 0.0
    %992 = vmatprep.subr.mxu0 0.0
    %993 = vmatpush2.msra.mxu0 0.0
    %994 = vmatprep.subr.mxu0 0.0
    %995 = vmatpush2.msra.mxu0 0.0
    %996 = vmatprep.subr.mxu0 0.0
    %997 = vmatpush2.msra.mxu0 0.0
    %998 = vmatprep.subr.mxu0 0.0
    %999 = vmatpush2.msra.mxu0 0.0
    %1000 = vmatprep.subr.mxu0 0.0
    %1001 = vmatpush2.msra.mxu0 0.0
    %1002 = vmatprep.subr.mxu0 0.0
    %1003 = vmatpush2.msra.mxu0 0.0
    %1004 = vmatprep.subr.mxu0 0.0
    %1005 = vmatpush2.msra.mxu0 0.0
    %1006 = vmatprep.subr.mxu0 0.0
    %1007 = vmatpush2.msra.mxu0 0.0
    %1008 = vmatprep.subr.mxu0 0.0
    %1009 = vmatpush2.msra.mxu0 0.0
    %1010 = vmatprep.subr.mxu0 0.0
    %1011 = vmatpush2.msra.mxu0 0.0
    %1012 = vmatprep.subr.mxu0 0.0
    %1013 = vmatpush2.msra.mxu0 0.0
    %1014 = vmatprep.subr.mxu0 0.0
    %1015 = vmatpush2.msra.mxu0 0.0
    %1016 = vmatprep.mubr.f32.mxu0 0.0
    %1017 = vmatmul.mubr.f32.gmra.mxu0 %v950
    %v1018 = vpop.f32.mrf.mxu0
    %v1019 = vadd.f32 0.0, %v1018
    %v1020 = vpop.f32.mrf.mxu0
    %1021 = vdwg.mxu0
    %1022 = vrot.lane.b32.xlu0 %v194, 112
    %v1023 = vpop.permute.xlu0 %1022
    %v1026 = vsel %vm235, %v939, 0
    %1028 = vmatprep.subr.mxu0 0.0
    %1029 = vmatpush1.msra.mxu0 0.0
    %1030 = vmatprep.subr.mxu0 0.0
    %1031 = vmatpush1.msra.mxu0 0.0
    %1032 = vmatprep.subr.mxu0 0.0
    %1033 = vmatpush1.msra.mxu0 0.0
    %1034 = vmatprep.subr.mxu0 0.0
    %1035 = vmatpush1.msra.mxu0 0.0
    %1036 = vmatprep.subr.mxu0 0.0
    %1037 = vmatpush1.msra.mxu0 0.0
    %1038 = vmatprep.subr.mxu0 0.0
    %1039 = vmatpush1.msra.mxu0 0.0
    %1040 = vmatprep.subr.mxu0 0.0
    %1041 = vmatpush1.msra.mxu0 0.0
    %1042 = vmatprep.subr.mxu0 0.0
    %1043 = vmatpush1.msra.mxu0 0.0
    %1044 = vmatprep.subr.mxu0 0.0
    %1045 = vmatpush1.msra.mxu0 0.0
    %1046 = vmatprep.subr.mxu0 0.0
    %1047 = vmatpush1.msra.mxu0 0.0
    %1048 = vmatprep.subr.mxu0 0.0
    %1049 = vmatpush1.msra.mxu0 0.0
    %1050 = vmatprep.subr.mxu0 0.0
    %1051 = vmatpush1.msra.mxu0 0.0
    %1052 = vmatprep.subr.mxu0 0.0
    %1053 = vmatpush1.msra.mxu0 0.0
    %1054 = vmatprep.subr.mxu0 0.0
    %1055 = vmatpush1.msra.mxu0 0.0
    %1056 = vmatprep.subr.mxu0 0.0
    %1057 = vmatpush1.msra.mxu0 0.0
    %1058 = vmatprep.subr.mxu0 0.0
    %1059 = vmatpush1.msra.mxu0 %v1023
    %1060 = vmatprep.subr.mxu0 0.0
    %1061 = vmatpush2.msra.mxu0 0.0
    %1062 = vmatprep.subr.mxu0 0.0
    %1063 = vmatpush2.msra.mxu0 0.0
    %1064 = vmatprep.subr.mxu0 0.0
    %1065 = vmatpush2.msra.mxu0 0.0
    %1066 = vmatprep.subr.mxu0 0.0
    %1067 = vmatpush2.msra.mxu0 0.0
    %1068 = vmatprep.subr.mxu0 0.0
    %1069 = vmatpush2.msra.mxu0 0.0
    %1070 = vmatprep.subr.mxu0 0.0
    %1071 = vmatpush2.msra.mxu0 0.0
    %1072 = vmatprep.subr.mxu0 0.0
    %1073 = vmatpush2.msra.mxu0 0.0
    %1074 = vmatprep.subr.mxu0 0.0
    %1075 = vmatpush2.msra.mxu0 0.0
    %1076 = vmatprep.subr.mxu0 0.0
    %1077 = vmatpush2.msra.mxu0 0.0
    %1078 = vmatprep.subr.mxu0 0.0
    %1079 = vmatpush2.msra.mxu0 0.0
    %1080 = vmatprep.subr.mxu0 0.0
    %1081 = vmatpush2.msra.mxu0 0.0
    %1082 = vmatprep.subr.mxu0 0.0
    %1083 = vmatpush2.msra.mxu0 0.0
    %1084 = vmatprep.subr.mxu0 0.0
    %1085 = vmatpush2.msra.mxu0 0.0
    %1086 = vmatprep.subr.mxu0 0.0
    %1087 = vmatpush2.msra.mxu0 0.0
    %1088 = vmatprep.subr.mxu0 0.0
    %1089 = vmatpush2.msra.mxu0 0.0
    %1090 = vmatprep.subr.mxu0 0.0
    %1091 = vmatpush2.msra.mxu0 0.0
    %1092 = vmatprep.mubr.f32.mxu0 0.0
    %1093 = vmatmul.mubr.f32.gmra.mxu0 %v1026
    %v1094 = vpop.f32.mrf.mxu0
    %v1095 = vadd.f32 0.0, %v1094
    %v1096 = vpop.f32.mrf.mxu0
    %1097 = vdwg.mxu0
    %1098 = vrot.lane.b32.xlu0 %v196, 112
    %v1099 = vpop.permute.xlu0 %1098
    %v1102 = vsel %vm235, %v940, 0
    %1104 = vmatprep.subr.mxu0 0.0
    %1105 = vmatpush1.msra.mxu0 0.0
    %1106 = vmatprep.subr.mxu0 0.0
    %1107 = vmatpush1.msra.mxu0 0.0
    %1108 = vmatprep.subr.mxu0 0.0
    %1109 = vmatpush1.msra.mxu0 0.0
    %1110 = vmatprep.subr.mxu0 0.0
    %1111 = vmatpush1.msra.mxu0 0.0
    %1112 = vmatprep.subr.mxu0 0.0
    %1113 = vmatpush1.msra.mxu0 0.0
    %1114 = vmatprep.subr.mxu0 0.0
    %1115 = vmatpush1.msra.mxu0 0.0
    %1116 = vmatprep.subr.mxu0 0.0
    %1117 = vmatpush1.msra.mxu0 0.0
    %1118 = vmatprep.subr.mxu0 0.0
    %1119 = vmatpush1.msra.mxu0 0.0
    %1120 = vmatprep.subr.mxu0 0.0
    %1121 = vmatpush1.msra.mxu0 0.0
    %1122 = vmatprep.subr.mxu0 0.0
    %1123 = vmatpush1.msra.mxu0 0.0
    %1124 = vmatprep.subr.mxu0 0.0
    %1125 = vmatpush1.msra.mxu0 0.0
    %1126 = vmatprep.subr.mxu0 0.0
    %1127 = vmatpush1.msra.mxu0 0.0
    %1128 = vmatprep.subr.mxu0 0.0
    %1129 = vmatpush1.msra.mxu0 0.0
    %1130 = vmatprep.subr.mxu0 0.0
    %1131 = vmatpush1.msra.mxu0 0.0
    %1132 = vmatprep.subr.mxu0 0.0
    %1133 = vmatpush1.msra.mxu0 0.0
    %1134 = vmatprep.subr.mxu0 0.0
    %1135 = vmatpush1.msra.mxu0 %v1099
    %1136 = vmatprep.subr.mxu0 0.0
    %1137 = vmatpush2.msra.mxu0 0.0
    %1138 = vmatprep.subr.mxu0 0.0
    %1139 = vmatpush2.msra.mxu0 0.0
    %1140 = vmatprep.subr.mxu0 0.0
    %1141 = vmatpush2.msra.mxu0 0.0
    %1142 = vmatprep.subr.mxu0 0.0
    %1143 = vmatpush2.msra.mxu0 0.0
    %1144 = vmatprep.subr.mxu0 0.0
    %1145 = vmatpush2.msra.mxu0 0.0
    %1146 = vmatprep.subr.mxu0 0.0
    %1147 = vmatpush2.msra.mxu0 0.0
    %1148 = vmatprep.subr.mxu0 0.0
    %1149 = vmatpush2.msra.mxu0 0.0
    %1150 = vmatprep.subr.mxu0 0.0
    %1151 = vmatpush2.msra.mxu0 0.0
    %1152 = vmatprep.subr.mxu0 0.0
    %1153 = vmatpush2.msra.mxu0 0.0
    %1154 = vmatprep.subr.mxu0 0.0
    %1155 = vmatpush2.msra.mxu0 0.0
    %1156 = vmatprep.subr.mxu0 0.0
    %1157 = vmatpush2.msra.mxu0 0.0
    %1158 = vmatprep.subr.mxu0 0.0
    %1159 = vmatpush2.msra.mxu0 0.0
    %1160 = vmatprep.subr.mxu0 0.0
    %1161 = vmatpush2.msra.mxu0 0.0
    %1162 = vmatprep.subr.mxu0 0.0
    %1163 = vmatpush2.msra.mxu0 0.0
    %1164 = vmatprep.subr.mxu0 0.0
    %1165 = vmatpush2.msra.mxu0 0.0
    %1166 = vmatprep.subr.mxu0 0.0
    %1167 = vmatpush2.msra.mxu0 0.0
    %1168 = vmatprep.mubr.f32.mxu0 0.0
    %1169 = vmatmul.mubr.f32.gmra.mxu0 %v1102
    %v1170 = vpop.f32.mrf.mxu0
    %v1171 = vadd.f32 0.0, %v1170
    %v1172 = vpop.f32.mrf.mxu0
    %1173 = vdwg.mxu0
    %1174 = vrot.lane.b32.xlu0 %v198, 112
    %v1175 = vpop.permute.xlu0 %1174
    %v1178 = vsel %vm235, %v941, 0
    %1180 = vmatprep.subr.mxu0 0.0
    %1181 = vmatpush1.msra.mxu0 0.0
    %1182 = vmatprep.subr.mxu0 0.0
    %1183 = vmatpush1.msra.mxu0 0.0
    %1184 = vmatprep.subr.mxu0 0.0
    %1185 = vmatpush1.msra.mxu0 0.0
    %1186 = vmatprep.subr.mxu0 0.0
    %1187 = vmatpush1.msra.mxu0 0.0
    %1188 = vmatprep.subr.mxu0 0.0
    %1189 = vmatpush1.msra.mxu0 0.0
    %1190 = vmatprep.subr.mxu0 0.0
    %1191 = vmatpush1.msra.mxu0 0.0
    %1192 = vmatprep.subr.mxu0 0.0
    %1193 = vmatpush1.msra.mxu0 0.0
    %1194 = vmatprep.subr.mxu0 0.0
    %1195 = vmatpush1.msra.mxu0 0.0
    %1196 = vmatprep.subr.mxu0 0.0
    %1197 = vmatpush1.msra.mxu0 0.0
    %1198 = vmatprep.subr.mxu0 0.0
    %1199 = vmatpush1.msra.mxu0 0.0
    %1200 = vmatprep.subr.mxu0 0.0
    %1201 = vmatpush1.msra.mxu0 0.0
    %1202 = vmatprep.subr.mxu0 0.0
    %1203 = vmatpush1.msra.mxu0 0.0
    %1204 = vmatprep.subr.mxu0 0.0
    %1205 = vmatpush1.msra.mxu0 0.0
    %1206 = vmatprep.subr.mxu0 0.0
    %1207 = vmatpush1.msra.mxu0 0.0
    %1208 = vmatprep.subr.mxu0 0.0
    %1209 = vmatpush1.msra.mxu0 0.0
    %1210 = vmatprep.subr.mxu0 0.0
    %1211 = vmatpush1.msra.mxu0 %v1175
    %1212 = vmatprep.subr.mxu0 0.0
    %1213 = vmatpush2.msra.mxu0 0.0
    %1214 = vmatprep.subr.mxu0 0.0
    %1215 = vmatpush2.msra.mxu0 0.0
    %1216 = vmatprep.subr.mxu0 0.0
    %1217 = vmatpush2.msra.mxu0 0.0
    %1218 = vmatprep.subr.mxu0 0.0
    %1219 = vmatpush2.msra.mxu0 0.0
    %1220 = vmatprep.subr.mxu0 0.0
    %1221 = vmatpush2.msra.mxu0 0.0
    %1222 = vmatprep.subr.mxu0 0.0
    %1223 = vmatpush2.msra.mxu0 0.0
    %1224 = vmatprep.subr.mxu0 0.0
    %1225 = vmatpush2.msra.mxu0 0.0
    %1226 = vmatprep.subr.mxu0 0.0
    %1227 = vmatpush2.msra.mxu0 0.0
    %1228 = vmatprep.subr.mxu0 0.0
    %1229 = vmatpush2.msra.mxu0 0.0
    %1230 = vmatprep.subr.mxu0 0.0
    %1231 = vmatpush2.msra.mxu0 0.0
    %1232 = vmatprep.subr.mxu0 0.0
    %1233 = vmatpush2.msra.mxu0 0.0
    %1234 = vmatprep.subr.mxu0 0.0
    %1235 = vmatpush2.msra.mxu0 0.0
    %1236 = vmatprep.subr.mxu0 0.0
    %1237 = vmatpush2.msra.mxu0 0.0
    %1238 = vmatprep.subr.mxu0 0.0
    %1239 = vmatpush2.msra.mxu0 0.0
    %1240 = vmatprep.subr.mxu0 0.0
    %1241 = vmatpush2.msra.mxu0 0.0
    %1242 = vmatprep.subr.mxu0 0.0
    %1243 = vmatpush2.msra.mxu0 0.0
    %1244 = vmatprep.mubr.f32.mxu0 0.0
    %1245 = vmatmul.mubr.f32.gmra.mxu0 %v1178
    %v1246 = vpop.f32.mrf.mxu0
    %v1247 = vadd.f32 0.0, %v1246
    %v1248 = vpop.f32.mrf.mxu0
    %1249 = vdwg.mxu0
    %1250 = vrot.lane.b32.xlu0 %v189, 112
    %v1251 = vpop.permute.xlu0 %1250
    %v1254 = vsel %vm235, %v942, 0
    %1256 = vmatprep.subr.mxu0 0.0
    %1257 = vmatpush1.msra.mxu0 0.0
    %1258 = vmatprep.subr.mxu0 0.0
    %1259 = vmatpush1.msra.mxu0 0.0
    %1260 = vmatprep.subr.mxu0 0.0
    %1261 = vmatpush1.msra.mxu0 0.0
    %1262 = vmatprep.subr.mxu0 0.0
    %1263 = vmatpush1.msra.mxu0 0.0
    %1264 = vmatprep.subr.mxu0 0.0
    %1265 = vmatpush1.msra.mxu0 0.0
    %1266 = vmatprep.subr.mxu0 0.0
    %1267 = vmatpush1.msra.mxu0 0.0
    %1268 = vmatprep.subr.mxu0 0.0
    %1269 = vmatpush1.msra.mxu0 0.0
    %1270 = vmatprep.subr.mxu0 0.0
    %1271 = vmatpush1.msra.mxu0 0.0
    %1272 = vmatprep.subr.mxu0 0.0
    %1273 = vmatpush1.msra.mxu0 0.0
    %1274 = vmatprep.subr.mxu0 0.0
    %1275 = vmatpush1.msra.mxu0 0.0
    %1276 = vmatprep.subr.mxu0 0.0
    %1277 = vmatpush1.msra.mxu0 0.0
    %1278 = vmatprep.subr.mxu0 0.0
    %1279 = vmatpush1.msra.mxu0 0.0
    %1280 = vmatprep.subr.mxu0 0.0
    %1281 = vmatpush1.msra.mxu0 0.0
    %1282 = vmatprep.subr.mxu0 0.0
    %1283 = vmatpush1.msra.mxu0 0.0
    %1284 = vmatprep.subr.mxu0 0.0
    %1285 = vmatpush1.msra.mxu0 0.0
    %1286 = vmatprep.subr.mxu0 0.0
    %1287 = vmatpush1.msra.mxu0 %v1251
    %1288 = vmatprep.subr.mxu0 0.0
    %1289 = vmatpush2.msra.mxu0 0.0
    %1290 = vmatprep.subr.mxu0 0.0
    %1291 = vmatpush2.msra.mxu0 0.0
    %1292 = vmatprep.subr.mxu0 0.0
    %1293 = vmatpush2.msra.mxu0 0.0
    %1294 = vmatprep.subr.mxu0 0.0
    %1295 = vmatpush2.msra.mxu0 0.0
    %1296 = vmatprep.subr.mxu0 0.0
    %1297 = vmatpush2.msra.mxu0 0.0
    %1298 = vmatprep.subr.mxu0 0.0
    %1299 = vmatpush2.msra.mxu0 0.0
    %1300 = vmatprep.subr.mxu0 0.0
    %1301 = vmatpush2.msra.mxu0 0.0
    %1302 = vmatprep.subr.mxu0 0.0
    %1303 = vmatpush2.msra.mxu0 0.0
    %1304 = vmatprep.subr.mxu0 0.0
    %1305 = vmatpush2.msra.mxu0 0.0
    %1306 = vmatprep.subr.mxu0 0.0
    %1307 = vmatpush2.msra.mxu0 0.0
    %1308 = vmatprep.subr.mxu0 0.0
    %1309 = vmatpush2.msra.mxu0 0.0
    %1310 = vmatprep.subr.mxu0 0.0
    %1311 = vmatpush2.msra.mxu0 0.0
    %1312 = vmatprep.subr.mxu0 0.0
    %1313 = vmatpush2.msra.mxu0 0.0
    %1314 = vmatprep.subr.mxu0 0.0
    %1315 = vmatpush2.msra.mxu0 0.0
    %1316 = vmatprep.subr.mxu0 0.0
    %1317 = vmatpush2.msra.mxu0 0.0
    %1318 = vmatprep.subr.mxu0 0.0
    %1319 = vmatpush2.msra.mxu0 0.0
    %1320 = vmatprep.mubr.f32.mxu0 0.0
    %1321 = vmatmul.mubr.f32.gmra.mxu0 %v1254
    %v1322 = vpop.f32.mrf.mxu0
    %v1323 = vadd.f32 0.0, %v1322
    %v1324 = vpop.f32.mrf.mxu0
    %1325 = vdwg.mxu0
    %1326 = vrot.lane.b32.xlu0 %v201, 112
    %v1327 = vpop.permute.xlu0 %1326
    %v1330 = vsel %vm235, %v943, 0
    %1332 = vmatprep.subr.mxu0 0.0
    %1333 = vmatpush1.msra.mxu0 0.0
    %1334 = vmatprep.subr.mxu0 0.0
    %1335 = vmatpush1.msra.mxu0 0.0
    %1336 = vmatprep.subr.mxu0 0.0
    %1337 = vmatpush1.msra.mxu0 0.0
    %1338 = vmatprep.subr.mxu0 0.0
    %1339 = vmatpush1.msra.mxu0 0.0
    %1340 = vmatprep.subr.mxu0 0.0
    %1341 = vmatpush1.msra.mxu0 0.0
    %1342 = vmatprep.subr.mxu0 0.0
    %1343 = vmatpush1.msra.mxu0 0.0
    %1344 = vmatprep.subr.mxu0 0.0
    %1345 = vmatpush1.msra.mxu0 0.0
    %1346 = vmatprep.subr.mxu0 0.0
    %1347 = vmatpush1.msra.mxu0 0.0
    %1348 = vmatprep.subr.mxu0 0.0
    %1349 = vmatpush1.msra.mxu0 0.0
    %1350 = vmatprep.subr.mxu0 0.0
    %1351 = vmatpush1.msra.mxu0 0.0
    %1352 = vmatprep.subr.mxu0 0.0
    %1353 = vmatpush1.msra.mxu0 0.0
    %1354 = vmatprep.subr.mxu0 0.0
    %1355 = vmatpush1.msra.mxu0 0.0
    %1356 = vmatprep.subr.mxu0 0.0
    %1357 = vmatpush1.msra.mxu0 0.0
    %1358 = vmatprep.subr.mxu0 0.0
    %1359 = vmatpush1.msra.mxu0 0.0
    %1360 = vmatprep.subr.mxu0 0.0
    %1361 = vmatpush1.msra.mxu0 0.0
    %1362 = vmatprep.subr.mxu0 0.0
    %1363 = vmatpush1.msra.mxu0 %v1327
    %1364 = vmatprep.subr.mxu0 0.0
    %1365 = vmatpush2.msra.mxu0 0.0
    %1366 = vmatprep.subr.mxu0 0.0
    %1367 = vmatpush2.msra.mxu0 0.0
    %1368 = vmatprep.subr.mxu0 0.0
    %1369 = vmatpush2.msra.mxu0 0.0
    %1370 = vmatprep.subr.mxu0 0.0
    %1371 = vmatpush2.msra.mxu0 0.0
    %1372 = vmatprep.subr.mxu0 0.0
    %1373 = vmatpush2.msra.mxu0 0.0
    %1374 = vmatprep.subr.mxu0 0.0
    %1375 = vmatpush2.msra.mxu0 0.0
    %1376 = vmatprep.subr.mxu0 0.0
    %1377 = vmatpush2.msra.mxu0 0.0
    %1378 = vmatprep.subr.mxu0 0.0
    %1379 = vmatpush2.msra.mxu0 0.0
    %1380 = vmatprep.subr.mxu0 0.0
    %1381 = vmatpush2.msra.mxu0 0.0
    %1382 = vmatprep.subr.mxu0 0.0
    %1383 = vmatpush2.msra.mxu0 0.0
    %1384 = vmatprep.subr.mxu0 0.0
    %1385 = vmatpush2.msra.mxu0 0.0
    %1386 = vmatprep.subr.mxu0 0.0
    %1387 = vmatpush2.msra.mxu0 0.0
    %1388 = vmatprep.subr.mxu0 0.0
    %1389 = vmatpush2.msra.mxu0 0.0
    %1390 = vmatprep.subr.mxu0 0.0
    %1391 = vmatpush2.msra.mxu0 0.0
    %1392 = vmatprep.subr.mxu0 0.0
    %1393 = vmatpush2.msra.mxu0 0.0
    %1394 = vmatprep.subr.mxu0 0.0
    %1395 = vmatpush2.msra.mxu0 0.0
    %1396 = vmatprep.mubr.f32.mxu0 0.0
    %1397 = vmatmul.mubr.f32.gmra.mxu0 %v1330
    %v1398 = vpop.f32.mrf.mxu0
    %v1399 = vadd.f32 0.0, %v1398
    %v1400 = vpop.f32.mrf.mxu0
    %1401 = vdwg.mxu0
    %1402 = vrot.lane.b32.xlu0 %v203, 112
    %v1403 = vpop.permute.xlu0 %1402
    %v1406 = vsel %vm235, %v944, 0
    %1408 = vmatprep.subr.mxu0 0.0
    %1409 = vmatpush1.msra.mxu0 0.0
    %1410 = vmatprep.subr.mxu0 0.0
    %1411 = vmatpush1.msra.mxu0 0.0
    %1412 = vmatprep.subr.mxu0 0.0
    %1413 = vmatpush1.msra.mxu0 0.0
    %1414 = vmatprep.subr.mxu0 0.0
    %1415 = vmatpush1.msra.mxu0 0.0
    %1416 = vmatprep.subr.mxu0 0.0
    %1417 = vmatpush1.msra.mxu0 0.0
    %1418 = vmatprep.subr.mxu0 0.0
    %1419 = vmatpush1.msra.mxu0 0.0
    %1420 = vmatprep.subr.mxu0 0.0
    %1421 = vmatpush1.msra.mxu0 0.0
    %1422 = vmatprep.subr.mxu0 0.0
    %1423 = vmatpush1.msra.mxu0 0.0
    %1424 = vmatprep.subr.mxu0 0.0
    %1425 = vmatpush1.msra.mxu0 0.0
    %1426 = vmatprep.subr.mxu0 0.0
    %1427 = vmatpush1.msra.mxu0 0.0
    %1428 = vmatprep.subr.mxu0 0.0
    %1429 = vmatpush1.msra.mxu0 0.0
    %1430 = vmatprep.subr.mxu0 0.0
    %1431 = vmatpush1.msra.mxu0 0.0
    %1432 = vmatprep.subr.mxu0 0.0
    %1433 = vmatpush1.msra.mxu0 0.0
    %1434 = vmatprep.subr.mxu0 0.0
    %1435 = vmatpush1.msra.mxu0 0.0
    %1436 = vmatprep.subr.mxu0 0.0
    %1437 = vmatpush1.msra.mxu0 0.0
    %1438 = vmatprep.subr.mxu0 0.0
    %1439 = vmatpush1.msra.mxu0 %v1403
    %1440 = vmatprep.subr.mxu0 0.0
    %1441 = vmatpush2.msra.mxu0 0.0
    %1442 = vmatprep.subr.mxu0 0.0
    %1443 = vmatpush2.msra.mxu0 0.0
    %1444 = vmatprep.subr.mxu0 0.0
    %1445 = vmatpush2.msra.mxu0 0.0
    %1446 = vmatprep.subr.mxu0 0.0
    %1447 = vmatpush2.msra.mxu0 0.0
    %1448 = vmatprep.subr.mxu0 0.0
    %1449 = vmatpush2.msra.mxu0 0.0
    %1450 = vmatprep.subr.mxu0 0.0
    %1451 = vmatpush2.msra.mxu0 0.0
    %1452 = vmatprep.subr.mxu0 0.0
    %1453 = vmatpush2.msra.mxu0 0.0
    %1454 = vmatprep.subr.mxu0 0.0
    %1455 = vmatpush2.msra.mxu0 0.0
    %1456 = vmatprep.subr.mxu0 0.0
    %1457 = vmatpush2.msra.mxu0 0.0
    %1458 = vmatprep.subr.mxu0 0.0
    %1459 = vmatpush2.msra.mxu0 0.0
    %1460 = vmatprep.subr.mxu0 0.0
    %1461 = vmatpush2.msra.mxu0 0.0
    %1462 = vmatprep.subr.mxu0 0.0
    %1463 = vmatpush2.msra.mxu0 0.0
    %1464 = vmatprep.subr.mxu0 0.0
    %1465 = vmatpush2.msra.mxu0 0.0
    %1466 = vmatprep.subr.mxu0 0.0
    %1467 = vmatpush2.msra.mxu0 0.0
    %1468 = vmatprep.subr.mxu0 0.0
    %1469 = vmatpush2.msra.mxu0 0.0
    %1470 = vmatprep.subr.mxu0 0.0
    %1471 = vmatpush2.msra.mxu0 0.0
    %1472 = vmatprep.mubr.f32.mxu0 0.0
    %1473 = vmatmul.mubr.f32.gmra.mxu0 %v1406
    %v1474 = vpop.f32.mrf.mxu0
    %v1475 = vadd.f32 0.0, %v1474
    %v1476 = vpop.f32.mrf.mxu0
    %1477 = vdwg.mxu0
    %1478 = vrot.lane.b32.xlu0 %v205, 112
    %v1479 = vpop.permute.xlu0 %1478
    %v1482 = vsel %vm235, %v945, 0
    %1484 = vmatprep.subr.mxu0 0.0
    %1485 = vmatpush1.msra.mxu0 0.0
    %1486 = vmatprep.subr.mxu0 0.0
    %1487 = vmatpush1.msra.mxu0 0.0
    %1488 = vmatprep.subr.mxu0 0.0
    %1489 = vmatpush1.msra.mxu0 0.0
    %1490 = vmatprep.subr.mxu0 0.0
    %1491 = vmatpush1.msra.mxu0 0.0
    %1492 = vmatprep.subr.mxu0 0.0
    %1493 = vmatpush1.msra.mxu0 0.0
    %1494 = vmatprep.subr.mxu0 0.0
    %1495 = vmatpush1.msra.mxu0 0.0
    %1496 = vmatprep.subr.mxu0 0.0
    %1497 = vmatpush1.msra.mxu0 0.0
    %1498 = vmatprep.subr.mxu0 0.0
    %1499 = vmatpush1.msra.mxu0 0.0
    %1500 = vmatprep.subr.mxu0 0.0
    %1501 = vmatpush1.msra.mxu0 0.0
    %1502 = vmatprep.subr.mxu0 0.0
    %1503 = vmatpush1.msra.mxu0 0.0
    %1504 = vmatprep.subr.mxu0 0.0
    %1505 = vmatpush1.msra.mxu0 0.0
    %1506 = vmatprep.subr.mxu0 0.0
    %1507 = vmatpush1.msra.mxu0 0.0
    %1508 = vmatprep.subr.mxu0 0.0
    %1509 = vmatpush1.msra.mxu0 0.0
    %1510 = vmatprep.subr.mxu0 0.0
    %1511 = vmatpush1.msra.mxu0 0.0
    %1512 = vmatprep.subr.mxu0 0.0
    %1513 = vmatpush1.msra.mxu0 0.0
    %1514 = vmatprep.subr.mxu0 0.0
    %1515 = vmatpush1.msra.mxu0 %v1479
    %1516 = vmatprep.subr.mxu0 0.0
    %1517 = vmatpush2.msra.mxu0 0.0
    %1518 = vmatprep.subr.mxu0 0.0
    %1519 = vmatpush2.msra.mxu0 0.0
    %1520 = vmatprep.subr.mxu0 0.0
    %1521 = vmatpush2.msra.mxu0 0.0
    %1522 = vmatprep.subr.mxu0 0.0
    %1523 = vmatpush2.msra.mxu0 0.0
    %1524 = vmatprep.subr.mxu0 0.0
    %1525 = vmatpush2.msra.mxu0 0.0
    %1526 = vmatprep.subr.mxu0 0.0
    %1527 = vmatpush2.msra.mxu0 0.0
    %1528 = vmatprep.subr.mxu0 0.0
    %1529 = vmatpush2.msra.mxu0 0.0
    %1530 = vmatprep.subr.mxu0 0.0
    %1531 = vmatpush2.msra.mxu0 0.0
    %1532 = vmatprep.subr.mxu0 0.0
    %1533 = vmatpush2.msra.mxu0 0.0
    %1534 = vmatprep.subr.mxu0 0.0
    %1535 = vmatpush2.msra.mxu0 0.0
    %1536 = vmatprep.subr.mxu0 0.0
    %1537 = vmatpush2.msra.mxu0 0.0
    %1538 = vmatprep.subr.mxu0 0.0
    %1539 = vmatpush2.msra.mxu0 0.0
    %1540 = vmatprep.subr.mxu0 0.0
    %1541 = vmatpush2.msra.mxu0 0.0
    %1542 = vmatprep.subr.mxu0 0.0
    %1543 = vmatpush2.msra.mxu0 0.0
    %1544 = vmatprep.subr.mxu0 0.0
    %1545 = vmatpush2.msra.mxu0 0.0
    %1546 = vmatprep.subr.mxu0 0.0
    %1547 = vmatpush2.msra.mxu0 0.0
    %1548 = vmatprep.mubr.f32.mxu0 0.0
    %1549 = vmatmul.mubr.f32.gmra.mxu0 %v1482
    %v1550 = vpop.f32.mrf.mxu0
    %v1551 = vadd.f32 0.0, %v1550
    %v1552 = vpop.f32.mrf.mxu0
    %1553 = vdwg.mxu0
    %1555 = vrot.lane.b32.xlu0 %v1095, 8
    %v1556 = vpop.permute.xlu0 %1555
    %1559 = vrot.lane.b32.xlu0 %v1171, 16
    %v1560 = vpop.permute.xlu0 %1559
    %1563 = vrot.lane.b32.xlu0 %v1247, 24
    %v1564 = vpop.permute.xlu0 %1563
    %v1566 = vsel %vm235, %v1019, %v1556
    %vm1567 = vcmask 130048
    %v1568 = vsel %vm1567, %v1566, %v1560
    %vm1569 = vcmask 195584
    %v1570 = vsel %vm1569, %v1568, %v1564
    %1572 = vrot.lane.b32.xlu0 %v1399, 8
    %v1573 = vpop.permute.xlu0 %1572
    %1576 = vrot.lane.b32.xlu0 %v1475, 16
    %v1577 = vpop.permute.xlu0 %1576
    %1580 = vrot.lane.b32.xlu0 %v1551, 24
    %v1581 = vpop.permute.xlu0 %1580
    %v1583 = vsel %vm235, %v1323, %v1573
    %v1584 = vsel %vm1567, %v1583, %v1577
    %v1585 = vsel %vm1569, %v1584, %v1581
    %v1586 = vlaneseq
    %v1587 = vshrl.u32 %v1586, 7
    %v1588 = vsub.s32 1, %v1587
    %v1589 = vrot.slane %v89, %v1588
    %v1591 = vsel %vm110, %v1570, 0
    %v1594 = vsel %vm110, %v1585, 0
    %1596 = vmatprep.subr.mxu0 0.0
    %1597 = vmatpush1.msra.mxu0 0.0
    %1598 = vmatprep.subr.mxu0 0.0
    %1599 = vmatpush1.msra.mxu0 0.0
    %1600 = vmatprep.subr.mxu0 0.0
    %1601 = vmatpush1.msra.mxu0 0.0
    %1602 = vmatprep.subr.mxu0 0.0
    %1603 = vmatpush1.msra.mxu0 0.0
    %1604 = vmatprep.subr.mxu0 0.0
    %1605 = vmatpush1.msra.mxu0 0.0
    %1606 = vmatprep.subr.mxu0 0.0
    %1607 = vmatpush1.msra.mxu0 0.0
    %1608 = vmatprep.subr.mxu0 0.0
    %1609 = vmatpush1.msra.mxu0 0.0
    %1610 = vmatprep.subr.mxu0 0.0
    %1611 = vmatpush1.msra.mxu0 0.0
    %1612 = vmatprep.subr.mxu0 0.0
    %1613 = vmatpush1.msra.mxu0 0.0
    %1614 = vmatprep.subr.mxu0 0.0
    %1615 = vmatpush1.msra.mxu0 0.0
    %1616 = vmatprep.subr.mxu0 0.0
    %1617 = vmatpush1.msra.mxu0 0.0
    %1618 = vmatprep.subr.mxu0 0.0
    %1619 = vmatpush1.msra.mxu0 0.0
    %1620 = vmatprep.subr.mxu0 0.0
    %1621 = vmatpush1.msra.mxu0 %v93
    %1622 = vmatprep.subr.mxu0 0.0
    %1623 = vmatpush1.msra.mxu0 %v92
    %1624 = vmatprep.subr.mxu0 0.0
    %1625 = vmatpush1.msra.mxu0 %v91
    %1626 = vmatprep.subr.mxu0 0.0
    %1627 = vmatpush1.msra.mxu0 %v90
    %1628 = vmatprep.subr.mxu0 0.0
    %1629 = vmatpush2.msra.mxu0 0.0
    %1630 = vmatprep.subr.mxu0 0.0
    %1631 = vmatpush2.msra.mxu0 0.0
    %1632 = vmatprep.subr.mxu0 0.0
    %1633 = vmatpush2.msra.mxu0 0.0
    %1634 = vmatprep.subr.mxu0 0.0
    %1635 = vmatpush2.msra.mxu0 0.0
    %1636 = vmatprep.subr.mxu0 0.0
    %1637 = vmatpush2.msra.mxu0 0.0
    %1638 = vmatprep.subr.mxu0 0.0
    %1639 = vmatpush2.msra.mxu0 0.0
    %1640 = vmatprep.subr.mxu0 0.0
    %1641 = vmatpush2.msra.mxu0 0.0
    %1642 = vmatprep.subr.mxu0 0.0
    %1643 = vmatpush2.msra.mxu0 0.0
    %1644 = vmatprep.subr.mxu0 0.0
    %1645 = vmatpush2.msra.mxu0 0.0
    %1646 = vmatprep.subr.mxu0 0.0
    %1647 = vmatpush2.msra.mxu0 0.0
    %1648 = vmatprep.subr.mxu0 0.0
    %1649 = vmatpush2.msra.mxu0 0.0
    %1650 = vmatprep.subr.mxu0 0.0
    %1651 = vmatpush2.msra.mxu0 0.0
    %1652 = vmatprep.subr.mxu0 0.0
    %1653 = vmatpush2.msra.mxu0 0.0
    %1654 = vmatprep.subr.mxu0 0.0
    %1655 = vmatpush2.msra.mxu0 0.0
    %1656 = vmatprep.subr.mxu0 0.0
    %1657 = vmatpush2.msra.mxu0 0.0
    %1658 = vmatprep.subr.mxu0 0.0
    %1659 = vmatpush2.msra.mxu0 0.0
    %1660 = vmatprep.mubr.f32.mxu0 0.0
    %1661 = vmatmul.mubr.f32.gmra.mxu0 %v1591
    %v1662 = vpop.f32.mrf.mxu0
    %v1663 = vadd.f32 %v1589, %v1662
    %v1664 = vpop.f32.mrf.mxu0
    %1665 = vmatprep.mubr.f32.mxu0 0.0
    %1666 = vmatmul.mubr.f32.gmra.mxu0 %v1594
    %v1667 = vpop.f32.mrf.mxu0
    %v1668 = vadd.f32 %v1589, %v1667
    %v1669 = vpop.f32.mrf.mxu0
    %1670 = vdwg.mxu0
    %v1671 = vadd.f32 %v1663, %v87
    %v1672 = vadd.f32 %v1668, %v88
    %v1673 = vsel %vm110, %v1671, 0.0
    %1674 = vadd.xlane.f32.xlu0 %v1673
    %v1675 = vpop.xlane.xlu0 %1674
    %v1676 = vsel %vm110, %v1672, 0.0
    %1677 = vadd.xlane.f32.xlu0 %v1676
    %v1678 = vpop.xlane.xlu0 %1677
    %v1679 = vrcp.pop 32.0
    %v1680 = vmul.f32 %v1675, %v1679
    %v1681 = vmul.f32 %v1678, %v1679
    %v1682 = vsub.f32 %v1671, %v1680
    %v1683 = vsub.f32 %v1672, %v1681
    %v1684 = vmul.f32 %v1682, %v1682
    %v1685 = vmul.f32 %v1683, %v1683
    %v1686 = vsel %vm110, %v1684, 0.0
    %1687 = vadd.xlane.f32.xlu0 %v1686
    %v1688 = vpop.xlane.xlu0 %1687
    %v1689 = vsel %vm110, %v1685, 0.0
    %1690 = vadd.xlane.f32.xlu0 %v1689
    %v1691 = vpop.xlane.xlu0 %1690
    %v1692 = vrcp.pop 31.0
    %v1693 = vmul.f32 %v1688, %v1692
    %v1694 = vmul.f32 %v1691, %v1692
    %v1695 = vadd.f32 %v1693, 1e-12
    %v1696 = vadd.f32 %v1694, 1e-12
    %v1697 = vrsqrt.pop %v1695
    %v1698 = vrsqrt.pop %v1696
    %v1699 = vmul.f32 %v1682, %v1697
    %v1700 = vmul.f32 %v1683, %v1698
    %v1701 = vlaneseq
    %v1702 = vshrl.u32 %v1701, 7
    %v1703 = vsub.s32 2, %v1702
    %v1704 = vrot.slane %v89, %v1703
    %v1705 = vmul.f32 %v1704, %v1699
    %v1706 = vmul.f32 %v1704, %v1700
    %v1707 = vlaneseq
    %v1708 = vshrl.u32 %v1707, 7
    %v1709 = vsub.s32 3, %v1708
    %v1710 = vrot.slane %v89, %v1709
    %v1711 = vadd.f32 %v1705, %v1710
    %v1712 = vadd.f32 %v1706, %v1710
    %v1713 = vlaneseq
    %v1714 = vshrl.u32 %v1713, 7
    %v1715 = vsub.s32 4, %v1714
    %v1716 = vrot.slane %v89, %v1715
    %v1718 = vsel %vm110, %v1711, 0
    %v1721 = vsel %vm110, %v1712, 0
    %1723 = vmatprep.subr.mxu0 0.0
    %1724 = vmatpush1.msra.mxu0 0.0
    %1725 = vmatprep.subr.mxu0 0.0
    %1726 = vmatpush1.msra.mxu0 0.0
    %1727 = vmatprep.subr.mxu0 0.0
    %1728 = vmatpush1.msra.mxu0 0.0
    %1729 = vmatprep.subr.mxu0 0.0
    %1730 = vmatpush1.msra.mxu0 0.0
    %1731 = vmatprep.subr.mxu0 0.0
    %1732 = vmatpush1.msra.mxu0 0.0
    %1733 = vmatprep.subr.mxu0 0.0
    %1734 = vmatpush1.msra.mxu0 0.0
    %1735 = vmatprep.subr.mxu0 0.0
    %1736 = vmatpush1.msra.mxu0 0.0
    %1737 = vmatprep.subr.mxu0 0.0
    %1738 = vmatpush1.msra.mxu0 0.0
    %1739 = vmatprep.subr.mxu0 0.0
    %1740 = vmatpush1.msra.mxu0 0.0
    %1741 = vmatprep.subr.mxu0 0.0
    %1742 = vmatpush1.msra.mxu0 0.0
    %1743 = vmatprep.subr.mxu0 0.0
    %1744 = vmatpush1.msra.mxu0 0.0
    %1745 = vmatprep.subr.mxu0 0.0
    %1746 = vmatpush1.msra.mxu0 0.0
    %1747 = vmatprep.subr.mxu0 0.0
    %1748 = vmatpush1.msra.mxu0 %v97
    %1749 = vmatprep.subr.mxu0 0.0
    %1750 = vmatpush1.msra.mxu0 %v96
    %1751 = vmatprep.subr.mxu0 0.0
    %1752 = vmatpush1.msra.mxu0 %v95
    %1753 = vmatprep.subr.mxu0 0.0
    %1754 = vmatpush1.msra.mxu0 %v94
    %1755 = vmatprep.subr.mxu0 0.0
    %1756 = vmatpush2.msra.mxu0 0.0
    %1757 = vmatprep.subr.mxu0 0.0
    %1758 = vmatpush2.msra.mxu0 0.0
    %1759 = vmatprep.subr.mxu0 0.0
    %1760 = vmatpush2.msra.mxu0 0.0
    %1761 = vmatprep.subr.mxu0 0.0
    %1762 = vmatpush2.msra.mxu0 0.0
    %1763 = vmatprep.subr.mxu0 0.0
    %1764 = vmatpush2.msra.mxu0 0.0
    %1765 = vmatprep.subr.mxu0 0.0
    %1766 = vmatpush2.msra.mxu0 0.0
    %1767 = vmatprep.subr.mxu0 0.0
    %1768 = vmatpush2.msra.mxu0 0.0
    %1769 = vmatprep.subr.mxu0 0.0
    %1770 = vmatpush2.msra.mxu0 0.0
    %1771 = vmatprep.subr.mxu0 0.0
    %1772 = vmatpush2.msra.mxu0 0.0
    %1773 = vmatprep.subr.mxu0 0.0
    %1774 = vmatpush2.msra.mxu0 0.0
    %1775 = vmatprep.subr.mxu0 0.0
    %1776 = vmatpush2.msra.mxu0 0.0
    %1777 = vmatprep.subr.mxu0 0.0
    %1778 = vmatpush2.msra.mxu0 0.0
    %1779 = vmatprep.subr.mxu0 0.0
    %1780 = vmatpush2.msra.mxu0 0.0
    %1781 = vmatprep.subr.mxu0 0.0
    %1782 = vmatpush2.msra.mxu0 0.0
    %1783 = vmatprep.subr.mxu0 0.0
    %1784 = vmatpush2.msra.mxu0 0.0
    %1785 = vmatprep.subr.mxu0 0.0
    %1786 = vmatpush2.msra.mxu0 0.0
    %1787 = vmatprep.mubr.f32.mxu0 0.0
    %1788 = vmatmul.mubr.f32.gmra.mxu0 %v1718
    %v1789 = vpop.f32.mrf.mxu0
    %v1790 = vadd.f32 %v1716, %v1789
    %v1791 = vpop.f32.mrf.mxu0
    %1792 = vmatprep.mubr.f32.mxu0 0.0
    %1793 = vmatmul.mubr.f32.gmra.mxu0 %v1721
    %v1794 = vpop.f32.mrf.mxu0
    %v1795 = vadd.f32 %v1716, %v1794
    %v1796 = vpop.f32.mrf.mxu0
    %1797 = vdwg.mxu0
    %v1798 = vmul.f32 %v1790, 1.702
    %v1799 = vmul.f32 %v1795, 1.702
    %v1800 = vxor.u32 %v1798, 2147483648
    %v1801 = vxor.u32 %v1799, 2147483648
    %v1802 = vmul.f32 %v1800, 1.442695
    %v1803 = vpow.pop %v1802
    %v1804 = vmul.f32 %v1801, 1.442695
    %v1805 = vpow.pop %v1804
    %v1806 = vadd.f32 %v1803, 1.0
    %v1807 = vadd.f32 %v1805, 1.0
    %v1808 = vrcp.pop %v1806
    %v1809 = vmul.f32 1.0, %v1808
    %v1810 = vrcp.pop %v1807
    %v1811 = vmul.f32 1.0, %v1810
    %v1812 = vmul.f32 %v1790, %v1809
    %v1813 = vmul.f32 %v1795, %v1811
    %v1814 = vlaneseq
    %v1815 = vshrl.u32 %v1814, 7
    %v1816 = vsub.s32 5, %v1815
    %v1817 = vrot.slane %v89, %v1816
    %v1819 = vsel %vm110, %v1812, 0
    %v1822 = vsel %vm110, %v1813, 0
    %1824 = vmatprep.subr.mxu0 0.0
    %1825 = vmatpush1.msra.mxu0 0.0
    %1826 = vmatprep.subr.mxu0 0.0
    %1827 = vmatpush1.msra.mxu0 0.0
    %1828 = vmatprep.subr.mxu0 0.0
    %1829 = vmatpush1.msra.mxu0 0.0
    %1830 = vmatprep.subr.mxu0 0.0
    %1831 = vmatpush1.msra.mxu0 0.0
    %1832 = vmatprep.subr.mxu0 0.0
    %1833 = vmatpush1.msra.mxu0 0.0
    %1834 = vmatprep.subr.mxu0 0.0
    %1835 = vmatpush1.msra.mxu0 0.0
    %1836 = vmatprep.subr.mxu0 0.0
    %1837 = vmatpush1.msra.mxu0 0.0
    %1838 = vmatprep.subr.mxu0 0.0
    %1839 = vmatpush1.msra.mxu0 0.0
    %1840 = vmatprep.subr.mxu0 0.0
    %1841 = vmatpush1.msra.mxu0 0.0
    %1842 = vmatprep.subr.mxu0 0.0
    %1843 = vmatpush1.msra.mxu0 0.0
    %1844 = vmatprep.subr.mxu0 0.0
    %1845 = vmatpush1.msra.mxu0 0.0
    %1846 = vmatprep.subr.mxu0 0.0
    %1847 = vmatpush1.msra.mxu0 0.0
    %1848 = vmatprep.subr.mxu0 0.0
    %1849 = vmatpush1.msra.mxu0 %v101
    %1850 = vmatprep.subr.mxu0 0.0
    %1851 = vmatpush1.msra.mxu0 %v100
    %1852 = vmatprep.subr.mxu0 0.0
    %1853 = vmatpush1.msra.mxu0 %v99
    %1854 = vmatprep.subr.mxu0 0.0
    %1855 = vmatpush1.msra.mxu0 %v98
    %1856 = vmatprep.subr.mxu0 0.0
    %1857 = vmatpush2.msra.mxu0 0.0
    %1858 = vmatprep.subr.mxu0 0.0
    %1859 = vmatpush2.msra.mxu0 0.0
    %1860 = vmatprep.subr.mxu0 0.0
    %1861 = vmatpush2.msra.mxu0 0.0
    %1862 = vmatprep.subr.mxu0 0.0
    %1863 = vmatpush2.msra.mxu0 0.0
    %1864 = vmatprep.subr.mxu0 0.0
    %1865 = vmatpush2.msra.mxu0 0.0
    %1866 = vmatprep.subr.mxu0 0.0
    %1867 = vmatpush2.msra.mxu0 0.0
    %1868 = vmatprep.subr.mxu0 0.0
    %1869 = vmatpush2.msra.mxu0 0.0
    %1870 = vmatprep.subr.mxu0 0.0
    %1871 = vmatpush2.msra.mxu0 0.0
    %1872 = vmatprep.subr.mxu0 0.0
    %1873 = vmatpush2.msra.mxu0 0.0
    %1874 = vmatprep.subr.mxu0 0.0
    %1875 = vmatpush2.msra.mxu0 0.0
    %1876 = vmatprep.subr.mxu0 0.0
    %1877 = vmatpush2.msra.mxu0 0.0
    %1878 = vmatprep.subr.mxu0 0.0
    %1879 = vmatpush2.msra.mxu0 0.0
    %1880 = vmatprep.subr.mxu0 0.0
    %1881 = vmatpush2.msra.mxu0 0.0
    %1882 = vmatprep.subr.mxu0 0.0
    %1883 = vmatpush2.msra.mxu0 0.0
    %1884 = vmatprep.subr.mxu0 0.0
    %1885 = vmatpush2.msra.mxu0 0.0
    %1886 = vmatprep.subr.mxu0 0.0
    %1887 = vmatpush2.msra.mxu0 0.0
    %1888 = vmatprep.mubr.f32.mxu0 0.0
    %1889 = vmatmul.mubr.f32.gmra.mxu0 %v1819
    %v1890 = vpop.f32.mrf.mxu0
    %v1891 = vadd.f32 %v1817, %v1890
    %v1892 = vpop.f32.mrf.mxu0
    %1893 = vmatprep.mubr.f32.mxu0 0.0
    %1894 = vmatmul.mubr.f32.gmra.mxu0 %v1822
    %v1895 = vpop.f32.mrf.mxu0
    %v1896 = vadd.f32 %v1817, %v1895
    %v1897 = vpop.f32.mrf.mxu0
    %1898 = vdwg.mxu0
    %v1899 = vadd.f32 %v1891, %v1711
    %v1900 = vadd.f32 %v1896, %v1712
    %v1901 = vsel %vm110, %v1899, 0.0
    %1902 = vadd.xlane.f32.xlu0 %v1901
    %v1903 = vpop.xlane.xlu0 %1902
    %v1904 = vsel %vm110, %v1900, 0.0
    %1905 = vadd.xlane.f32.xlu0 %v1904
    %v1906 = vpop.xlane.xlu0 %1905
    %v1907 = vmul.f32 %v1903, %v1679
    %v1908 = vmul.f32 %v1906, %v1679
    %v1909 = vsub.f32 %v1899, %v1907
    %v1910 = vsub.f32 %v1900, %v1908
    %v1911 = vmul.f32 %v1909, %v1909
    %v1912 = vmul.f32 %v1910, %v1910
    %v1913 = vsel %vm110, %v1911, 0.0
    %1914 = vadd.xlane.f32.xlu0 %v1913
    %v1915 = vpop.xlane.xlu0 %1914
    %v1916 = vsel %vm110, %v1912, 0.0
    %1917 = vadd.xlane.f32.xlu0 %v1916
    %v1918 = vpop.xlane.xlu0 %1917
    %v1919 = vmul.f32 %v1915, %v1692
    %v1920 = vmul.f32 %v1918, %v1692
    %v1921 = vadd.f32 %v1919, 1e-12
    %v1922 = vadd.f32 %v1920, 1e-12
    %v1923 = vrsqrt.pop %v1921
    %v1924 = vrsqrt.pop %v1922
    %v1925 = vmul.f32 %v1909, %v1923
    %v1926 = vmul.f32 %v1910, %v1924
    %v1927 = vlaneseq
    %v1928 = vshrl.u32 %v1927, 7
    %v1929 = vsub.s32 6, %v1928
    %v1930 = vrot.slane %v89, %v1929
    %v1931 = vmul.f32 %v1930, %v1925
    %v1932 = vmul.f32 %v1930, %v1926
    %v1933 = vlaneseq
    %v1934 = vshrl.u32 %v1933, 7
    %v1935 = vsub.s32 7, %v1934
    %v1936 = vrot.slane %v89, %v1935
    %v1937 = vadd.f32 %v1931, %v1936
    %v1938 = vadd.f32 %v1932, %v1936
    %1939 = vst.msk [vmem:[#allocation11] sm:$0xff] %vm110, %v1937
    %1940 = vst.msk [vmem:[#allocation11 + $0x8] sm:$0xff] %vm110, %v1938
    // Predicated region
    $region42: #{tpu_custom_call.1} parent=1 // pred_check
      _
    $region43: #{tpu_custom_call.1} parent=1 // pred_check_branch
      %1942 = sbr.rel (0) target = $region45
    $region44: #{tpu_custom_call.1} parent=1 // pred_region
      %s1944 = ssub.s32 256, 256
      %1945 = vsyncadd [#allocation4], %s1944
      %s1946 = sshll.u32 [#allocation11], 4
      %s1947 = int_to_ptr.vmem [resolvable:$true] %s1946
      %1952 = dma.vmem_to_hbm [thread:$0]  %s1947, 256, %s5, [#allocation4], 128, 128, 8
    $region45: #{tpu_custom_call.1} parent=1 // pred_fallthru
      _
    // Predicated region
    $region46: #{tpu_custom_call.1} parent=1 // pred_check
      _
    $region47: #{tpu_custom_call.1} parent=1 // pred_check_branch
      %1954 = sbr.rel (0) target = $region49
    $region48: #{tpu_custom_call.1} parent=1 // pred_region
      %1955 = dma.done [#allocation4], 256
    $region49: #{tpu_custom_call.1} parent=1 // pred_fallthru
      _
    %1956 = vsyncpa [#allocation3], 1
    %1957 = vsyncpa [#allocation6], 1
    %1958 = vsyncpa [#allocation9], 1
    %1959 = vsyncpa [#allocation4], 1

</llo_original>
